<compile_context>
chip_gen: v7x
topology: tpu7x:2x2x1
jax: 0.10.0
libtpu: 0.0.40
codegen_flags: <defaults>
</compile_context>

<pallas_src>
import jax
import jax.numpy as jnp
from jax.experimental import pallas as pl
from jax.experimental.pallas import tpu as pltpu

KH, KW = 3, 3
C_OUT = 3


def _model_kernel(patches_ref, xt_ref, base_ref, icol_ref, jcol_ref,
                  w1_ref, w2_ref, b2_ref, o_ref):
    # patches_ref: (1, 27, TP)   im2col of x (ordered c, kh, kw) for conv1
    # xt_ref:      (1, C*W, H)   per-channel transposed image (resident over TP)
    # base_ref:    (18, TP)      un-offset sample positions + conv1 bias
    # icol_ref:    (H, 1)        row iota (float32)
    # jcol_ref:    (W, 1)        col iota (float32)
    # w1_ref:      (18, 27)      conv1 weight, im2col-packed
    # w2_ref:      (3, 27)       deform weight, cols ordered (tap, in_ch)
    # b2_ref:      (3, 1)        deform bias
    # o_ref:       (1, 3, TP)    output tile, channels-major, lane-dense
    _, CW, H = xt_ref.shape
    _, c_out, TP = o_ref.shape
    _, CKK, _ = patches_ref.shape
    taps = KH * KW
    c_in = CKK // taps
    W = CW // c_in

    # ---- conv1: one im2col matmul -> absolute sample positions --------------
    pos = jnp.dot(w1_ref[...], patches_ref[0],
                  preferred_element_type=jnp.float32) + base_ref[...]   # (18, TP)

    i_col = icol_ref[...]                                               # (H, 1)
    j_col = jcol_ref[...]                                               # (W, 1)

    # ---- triangle (zero-padded bilinear) weights for all 9 taps -------------
    ay_list, ax_list = [], []
    for k in range(taps):
        py = pos[2 * k:2 * k + 1, :]                                    # (1, TP)
        px = pos[2 * k + 1:2 * k + 2, :]                                # (1, TP)
        ay_list.append(jnp.maximum(0.0, 1.0 - jnp.abs(py - i_col)))     # (H, TP)
        ax_list.append(jnp.maximum(0.0, 1.0 - jnp.abs(px - j_col)))     # (W, TP)
    ay_all = jnp.concatenate(ay_list, axis=1)                           # (H, 9*TP)

    # ---- stage 1: single wide-N MXU matmul (contract over image rows) -------
    x_t = xt_ref[0]                                                     # (C*W, H)
    t_all = jnp.dot(x_t, ay_all, preferred_element_type=jnp.float32)    # (C*W, 9*TP)

    # ---- stage 2: per tap, multiply by ax and reduce over W on the VPU ------
    sampled_rows = []
    for k in range(taps):
        t_k = t_all[:, k * TP:(k + 1) * TP]                             # (C*W, TP)
        s_k = jnp.sum(t_k.reshape(c_in, W, TP) * ax_list[k][None, :, :],
                      axis=1)                                           # (C, TP)
        sampled_rows.append(s_k)
    sampled = jnp.concatenate(sampled_rows, axis=0)                     # (27, TP)

    # ---- single (3, 27) @ (27, TP) deform-weight matmul + bias --------------
    out = jnp.dot(w2_ref[...], sampled,
                  preferred_element_type=jnp.float32) + b2_ref[...]     # (3, TP)
    o_ref[0] = out.astype(o_ref.dtype)


def model_forward(x, w1, b1, w2, b2):
    """x: (B, 3, H, W) f32 -> (B, 3, H-2, W-2) f32 (PyTorch Model semantics)."""
    B, C, H, W = x.shape
    HO, WO = H - KH + 1, W - KW + 1
    P = HO * WO
    taps = KH * KW

    # ---- choose lane tile TP (multiple of 128) and pad P --------------------
    TP = 512
    p128 = ((P + 127) // 128) * 128
    if p128 <= TP:
        TP = p128
        P_pad = p128
    else:
        P_pad = ((P + TP - 1) // TP) * TP
    n_pt = P_pad // TP
    pad = P_pad - P

    # ---------- layout plumbing in the wrapper (kept out of the kernel) ------
    # im2col patches for conv1, rows ordered (c, kh, kw) to match w1.reshape
    cols = [x[:, :, kh:kh + HO, kw:kw + WO].reshape(B, C, P)
            for kh in range(KH) for kw in range(KW)]
    patches = jnp.stack(cols, axis=2).reshape(B, C * taps, P)            # (B, 27, P)
    patches = jnp.pad(patches, ((0, 0), (0, 0), (0, pad)))               # (B, 27, P_pad)

    # per-channel transposed image for the stage-1 bilinear matmul
    x_t = jnp.transpose(x, (0, 1, 3, 2)).reshape(B, C * W, H)            # (B, C*W, H)

    # un-offset sample positions, interleaved (y, x) per tap like torchvision,
    # pre-combined with the conv1 bias (saves an (18, TP) add per grid step)
    h_flat = jnp.repeat(jnp.arange(HO, dtype=jnp.float32), WO)           # (P,)
    w_flat = jnp.tile(jnp.arange(WO, dtype=jnp.float32), HO)             # (P,)
    rows = []
    for kh in range(KH):
        for kw in range(KW):
            rows.append(h_flat + kh)
            rows.append(w_flat + kw)
    base = jnp.stack(rows, axis=0) + b1.reshape(2 * taps, 1)             # (18, P)
    base = jnp.pad(base, ((0, 0), (0, pad)))                             # (18, P_pad)

    i_col = jnp.arange(H, dtype=jnp.float32).reshape(H, 1)
    j_col = jnp.arange(W, dtype=jnp.float32).reshape(W, 1)

    w1_packed = w1.reshape(2 * taps, C * taps)                           # (18, 27)
    # deform weight packed so columns are ordered (tap-major, in_ch-minor)
    w2_packed = jnp.transpose(w2, (0, 2, 3, 1)).reshape(C_OUT, taps * C)  # (3, 27)
    b2_2d = b2.reshape(C_OUT, 1)

    # ---- scheduling hints ----------------------------------------------------
    flops = int(B * n_pt * (2 * 18 * 27 * TP
                            + 2 * C * W * H * taps * TP      # fused stage-1 matmul
                            + 4 * (H + W) * taps * TP        # triangle weights
                            + 2 * C * W * taps * TP          # stage-2 mul+reduce
                            + 2 * C_OUT * 27 * TP))          # fused w2 matmul
    bytes_accessed = int(4 * (patches.size + x_t.size + B * base.size
                              + w1_packed.size + w2_packed.size
                              + B * C_OUT * P_pad))

    f32b = 4
    live_bytes = f32b * (C * W * taps * TP                   # t_all
                         + (H + W) * taps * TP               # ay_all / ax blocks
                         + 4 * 2 * taps * TP                 # pos & temporaries
                         + 2 * C * taps * TP)                # sampled / patch copy
    io_bytes = f32b * 2 * (C * taps * TP + 2 * taps * TP + C_OUT * TP + C * W * H)
    vmem_limit = int(min(64 * 1024 * 1024,
                         max(32 * 1024 * 1024, 2 * (live_bytes + io_bytes))))

    out_flat = pl.pallas_call(
        _model_kernel,
        out_shape=jax.ShapeDtypeStruct((B, C_OUT, P_pad), jnp.float32),
        grid_spec=pltpu.PrefetchScalarGridSpec(
            num_scalar_prefetch=0,
            grid=(B, n_pt),
            in_specs=[
                pl.BlockSpec((1, C * taps, TP), lambda b, t: (b, 0, t)),
                pl.BlockSpec((1, C * W, H), lambda b, t: (b, 0, 0)),
                pl.BlockSpec((2 * taps, TP), lambda b, t: (0, t)),
                pl.BlockSpec((H, 1), lambda b, t: (0, 0)),
                pl.BlockSpec((W, 1), lambda b, t: (0, 0)),
                pl.BlockSpec((2 * taps, C * taps), lambda b, t: (0, 0)),
                pl.BlockSpec((C_OUT, taps * C), lambda b, t: (0, 0)),
                pl.BlockSpec((C_OUT, 1), lambda b, t: (0, 0)),
            ],
            out_specs=pl.BlockSpec((1, C_OUT, TP), lambda b, t: (b, 0, t)),
        ),
        compiler_params=pltpu.CompilerParams(
            dimension_semantics=("parallel", "parallel"),
            vmem_limit_bytes=vmem_limit),
        cost_estimate=pl.CostEstimate(flops=flops, transcendentals=0,
                                      bytes_accessed=bytes_accessed),
    )(patches, x_t, base, i_col, j_col, w1_packed, w2_packed, b2_2d)

    return out_flat[:, :, :P].reshape(B, C_OUT, HO, WO)


def reference_forward(x, w1, b1, w2, b2):
    """Pure-JAX reference with identical deform_conv2d semantics."""
    off = jax.lax.conv_general_dilated(
        x, w1, window_strides=(1, 1), padding="VALID",
        dimension_numbers=("NCHW", "OIHW", "NCHW")) + b1[None, :, None, None]
    B, _, HO, WO = off.shape
    H, W = x.shape[2], x.shape[3]
    base_h = jnp.arange(HO, dtype=jnp.float32)[:, None]
    base_w = jnp.arange(WO, dtype=jnp.float32)[None, :]
    ii = jnp.arange(H, dtype=jnp.float32)
    jj = jnp.arange(W, dtype=jnp.float32)
    out = jnp.zeros((B, 3, HO, WO), jnp.float32) + b2[None, :, None, None]
    for kh in range(3):
        for kw in range(3):
            k = kh * 3 + kw
            py = base_h + kh + off[:, 2 * k]
            px = base_w + kw + off[:, 2 * k + 1]
            Ay = jnp.maximum(0.0, 1.0 - jnp.abs(py[..., None] - ii))  # (B,HO,WO,H)
            Ax = jnp.maximum(0.0, 1.0 - jnp.abs(px[..., None] - jj))  # (B,HO,WO,W)
            sampled = jnp.einsum("bhwi,bhwj,bcij->bchw", Ay, Ax, x)
            out = out + jnp.einsum("oc,bchw->bohw", w2[:, :, kh, kw], sampled)
    return out


if __name__ == "__main__":
    key = jax.random.PRNGKey(0)
    k1, k2, k3, k4, k5 = jax.random.split(key, 5)

    B, C, H, W = 2, 3, 16, 16
    x = jax.random.normal(k1, (B, C, H, W), jnp.float32)

    # Deterministic parameter init (PyTorch-style uniform(-1/sqrt(fan_in), ..)).
    bound1 = 1.0 / (3 * 3 * 3) ** 0.5
    w1 = jax.random.uniform(k2, (18, 3, 3, 3), jnp.float32, -bound1, bound1)
    b1 = jax.random.uniform(k3, (18,), jnp.float32, -bound1, bound1)
    bound2 = 1.0 / (3 * 3 * 3) ** 0.5
    w2 = jax.random.uniform(k4, (3, 3, 3, 3), jnp.float32, -bound2, bound2)
    b2 = jax.random.uniform(k5, (3,), jnp.float32, -bound2, bound2)

    out = model_forward(x, w1, b1, w2, b2)
    jax.block_until_ready(out)

    ref = reference_forward(x, w1, b1, w2, b2)
    assert out.shape == (B, 3, H - 2, W - 2), out.shape
    max_err = float(jnp.max(jnp.abs(out - ref)))
    assert jnp.allclose(out, ref, atol=1e-4, rtol=1e-4), max_err

    print("KERNEL_OK")
</pallas_src>

<mosaic_0001>
module attributes {stable_mosaic.version = 11 : i64} {
  func.func @_model_kernel(%arg0: i32, %arg1: i32, %arg2: memref<1x27x256xf32, #tpu.memory_space<vmem>>, %arg3: memref<1x48x16xf32, #tpu.memory_space<vmem>>, %arg4: memref<18x256xf32, #tpu.memory_space<vmem>>, %arg5: memref<16x1xf32, #tpu.memory_space<vmem>>, %arg6: memref<16x1xf32, #tpu.memory_space<vmem>>, %arg7: memref<18x27xf32, #tpu.memory_space<vmem>>, %arg8: memref<3x27xf32, #tpu.memory_space<vmem>>, %arg9: memref<3x1xf32, #tpu.memory_space<vmem>>, %arg10: memref<1x3x256xf32, #tpu.memory_space<vmem>>) attributes {dimension_semantics = [#tpu.dimension_semantics<parallel>, #tpu.dimension_semantics<parallel>], iteration_bounds = array<i64: 2, 1>, scalar_prefetch = 0 : i64, scratch_operands = 0 : i64, tpu.core_type = #tpu.core_type<tc>, window_params = [{transform_indices = @transform_0, window_bounds = array<i64: 1, 27, 256>}, {transform_indices = @transform_1, window_bounds = array<i64: 1, 48, 16>}, {transform_indices = @transform_2, window_bounds = array<i64: 18, 256>}, {pipeline_mode = #tpu.pipeline_mode<synchronous>, transform_indices = @transform_3, window_bounds = array<i64: 16, 1>}, {pipeline_mode = #tpu.pipeline_mode<synchronous>, transform_indices = @transform_4, window_bounds = array<i64: 16, 1>}, {pipeline_mode = #tpu.pipeline_mode<synchronous>, transform_indices = @transform_5, window_bounds = array<i64: 18, 27>}, {pipeline_mode = #tpu.pipeline_mode<synchronous>, transform_indices = @transform_6, window_bounds = array<i64: 3, 27>}, {pipeline_mode = #tpu.pipeline_mode<synchronous>, transform_indices = @transform_7, window_bounds = array<i64: 3, 1>}, {transform_indices = @transform_8, window_bounds = array<i64: 1, 3, 256>}]} {
    %c0 = arith.constant 0 : index
    %c0_0 = arith.constant 0 : index
    %0 = vector.load %arg7[%c0, %c0_0] : memref<18x27xf32, #tpu.memory_space<vmem>>, vector<18x27xf32>
    %c0_1 = arith.constant 0 : index
    %c0_2 = arith.constant 0 : index
    %c0_3 = arith.constant 0 : index
    %1 = vector.load %arg2[%c0_1, %c0_2, %c0_3] : memref<1x27x256xf32, #tpu.memory_space<vmem>>, vector<1x27x256xf32>
    %2 = vector.shape_cast %1 : vector<1x27x256xf32> to vector<27x256xf32>
    %cst = arith.constant dense<0.000000e+00> : vector<18x256xf32>
    %3 = tpu.matmul %0, %2, %cst {dimension_numbers = #tpu.dot_dimension_numbers<[1], [0], [0], [1], [0, 0, 1, 1], [], []>} : vector<18x27xf32>, vector<27x256xf32>, vector<18x256xf32> -> vector<18x256xf32>
    %c0_4 = arith.constant 0 : index
    %c0_5 = arith.constant 0 : index
    %4 = vector.load %arg4[%c0_4, %c0_5] : memref<18x256xf32, #tpu.memory_space<vmem>>, vector<18x256xf32>
    %5 = arith.addf %3, %4 : vector<18x256xf32>
    %c0_6 = arith.constant 0 : index
    %c0_7 = arith.constant 0 : index
    %6 = vector.load %arg5[%c0_6, %c0_7] : memref<16x1xf32, #tpu.memory_space<vmem>>, vector<16x1xf32>
    %c0_8 = arith.constant 0 : index
    %c0_9 = arith.constant 0 : index
    %7 = vector.load %arg6[%c0_8, %c0_9] : memref<16x1xf32, #tpu.memory_space<vmem>>, vector<16x1xf32>
    %8 = vector.extract_strided_slice %5 {offsets = [0, 0], sizes = [1, 256], strides = [1, 1]} : vector<18x256xf32> to vector<1x256xf32>
    %9 = vector.extract_strided_slice %5 {offsets = [1, 0], sizes = [1, 256], strides = [1, 1]} : vector<18x256xf32> to vector<1x256xf32>
    %10 = vector.broadcast %8 : vector<1x256xf32> to vector<16x256xf32>
    %11 = vector.broadcast %6 : vector<16x1xf32> to vector<16x256xf32>
    %12 = arith.subf %10, %11 : vector<16x256xf32>
    %13 = math.absf %12 : vector<16x256xf32>
    %cst_10 = arith.constant 1.000000e+00 : f32
    %14 = vector.broadcast %cst_10 : f32 to vector<16x256xf32>
    %15 = arith.subf %14, %13 : vector<16x256xf32>
    %cst_11 = arith.constant 0.000000e+00 : f32
    %16 = vector.broadcast %cst_11 : f32 to vector<16x256xf32>
    %17 = arith.maximumf %16, %15 : vector<16x256xf32>
    %18 = vector.broadcast %9 : vector<1x256xf32> to vector<16x256xf32>
    %19 = vector.broadcast %7 : vector<16x1xf32> to vector<16x256xf32>
    %20 = arith.subf %18, %19 : vector<16x256xf32>
    %21 = math.absf %20 : vector<16x256xf32>
    %cst_12 = arith.constant 1.000000e+00 : f32
    %22 = vector.broadcast %cst_12 : f32 to vector<16x256xf32>
    %23 = arith.subf %22, %21 : vector<16x256xf32>
    %cst_13 = arith.constant 0.000000e+00 : f32
    %24 = vector.broadcast %cst_13 : f32 to vector<16x256xf32>
    %25 = arith.maximumf %24, %23 : vector<16x256xf32>
    %26 = vector.extract_strided_slice %5 {offsets = [2, 0], sizes = [1, 256], strides = [1, 1]} : vector<18x256xf32> to vector<1x256xf32>
    %27 = vector.extract_strided_slice %5 {offsets = [3, 0], sizes = [1, 256], strides = [1, 1]} : vector<18x256xf32> to vector<1x256xf32>
    %28 = vector.broadcast %26 : vector<1x256xf32> to vector<16x256xf32>
    %29 = vector.broadcast %6 : vector<16x1xf32> to vector<16x256xf32>
    %30 = arith.subf %28, %29 : vector<16x256xf32>
    %31 = math.absf %30 : vector<16x256xf32>
    %cst_14 = arith.constant 1.000000e+00 : f32
    %32 = vector.broadcast %cst_14 : f32 to vector<16x256xf32>
    %33 = arith.subf %32, %31 : vector<16x256xf32>
    %cst_15 = arith.constant 0.000000e+00 : f32
    %34 = vector.broadcast %cst_15 : f32 to vector<16x256xf32>
    %35 = arith.maximumf %34, %33 : vector<16x256xf32>
    %36 = vector.broadcast %27 : vector<1x256xf32> to vector<16x256xf32>
    %37 = vector.broadcast %7 : vector<16x1xf32> to vector<16x256xf32>
    %38 = arith.subf %36, %37 : vector<16x256xf32>
    %39 = math.absf %38 : vector<16x256xf32>
    %cst_16 = arith.constant 1.000000e+00 : f32
    %40 = vector.broadcast %cst_16 : f32 to vector<16x256xf32>
    %41 = arith.subf %40, %39 : vector<16x256xf32>
    %cst_17 = arith.constant 0.000000e+00 : f32
    %42 = vector.broadcast %cst_17 : f32 to vector<16x256xf32>
    %43 = arith.maximumf %42, %41 : vector<16x256xf32>
    %44 = vector.extract_strided_slice %5 {offsets = [4, 0], sizes = [1, 256], strides = [1, 1]} : vector<18x256xf32> to vector<1x256xf32>
    %45 = vector.extract_strided_slice %5 {offsets = [5, 0], sizes = [1, 256], strides = [1, 1]} : vector<18x256xf32> to vector<1x256xf32>
    %46 = vector.broadcast %44 : vector<1x256xf32> to vector<16x256xf32>
    %47 = vector.broadcast %6 : vector<16x1xf32> to vector<16x256xf32>
    %48 = arith.subf %46, %47 : vector<16x256xf32>
    %49 = math.absf %48 : vector<16x256xf32>
    %cst_18 = arith.constant 1.000000e+00 : f32
    %50 = vector.broadcast %cst_18 : f32 to vector<16x256xf32>
    %51 = arith.subf %50, %49 : vector<16x256xf32>
    %cst_19 = arith.constant 0.000000e+00 : f32
    %52 = vector.broadcast %cst_19 : f32 to vector<16x256xf32>
    %53 = arith.maximumf %52, %51 : vector<16x256xf32>
    %54 = vector.broadcast %45 : vector<1x256xf32> to vector<16x256xf32>
    %55 = vector.broadcast %7 : vector<16x1xf32> to vector<16x256xf32>
    %56 = arith.subf %54, %55 : vector<16x256xf32>
    %57 = math.absf %56 : vector<16x256xf32>
    %cst_20 = arith.constant 1.000000e+00 : f32
    %58 = vector.broadcast %cst_20 : f32 to vector<16x256xf32>
    %59 = arith.subf %58, %57 : vector<16x256xf32>
    %cst_21 = arith.constant 0.000000e+00 : f32
    %60 = vector.broadcast %cst_21 : f32 to vector<16x256xf32>
    %61 = arith.maximumf %60, %59 : vector<16x256xf32>
    %62 = vector.extract_strided_slice %5 {offsets = [6, 0], sizes = [1, 256], strides = [1, 1]} : vector<18x256xf32> to vector<1x256xf32>
    %63 = vector.extract_strided_slice %5 {offsets = [7, 0], sizes = [1, 256], strides = [1, 1]} : vector<18x256xf32> to vector<1x256xf32>
    %64 = vector.broadcast %62 : vector<1x256xf32> to vector<16x256xf32>
    %65 = vector.broadcast %6 : vector<16x1xf32> to vector<16x256xf32>
    %66 = arith.subf %64, %65 : vector<16x256xf32>
    %67 = math.absf %66 : vector<16x256xf32>
    %cst_22 = arith.constant 1.000000e+00 : f32
    %68 = vector.broadcast %cst_22 : f32 to vector<16x256xf32>
    %69 = arith.subf %68, %67 : vector<16x256xf32>
    %cst_23 = arith.constant 0.000000e+00 : f32
    %70 = vector.broadcast %cst_23 : f32 to vector<16x256xf32>
    %71 = arith.maximumf %70, %69 : vector<16x256xf32>
    %72 = vector.broadcast %63 : vector<1x256xf32> to vector<16x256xf32>
    %73 = vector.broadcast %7 : vector<16x1xf32> to vector<16x256xf32>
    %74 = arith.subf %72, %73 : vector<16x256xf32>
    %75 = math.absf %74 : vector<16x256xf32>
    %cst_24 = arith.constant 1.000000e+00 : f32
    %76 = vector.broadcast %cst_24 : f32 to vector<16x256xf32>
    %77 = arith.subf %76, %75 : vector<16x256xf32>
    %cst_25 = arith.constant 0.000000e+00 : f32
    %78 = vector.broadcast %cst_25 : f32 to vector<16x256xf32>
    %79 = arith.maximumf %78, %77 : vector<16x256xf32>
    %80 = vector.extract_strided_slice %5 {offsets = [8, 0], sizes = [1, 256], strides = [1, 1]} : vector<18x256xf32> to vector<1x256xf32>
    %81 = vector.extract_strided_slice %5 {offsets = [9, 0], sizes = [1, 256], strides = [1, 1]} : vector<18x256xf32> to vector<1x256xf32>
    %82 = vector.broadcast %80 : vector<1x256xf32> to vector<16x256xf32>
    %83 = vector.broadcast %6 : vector<16x1xf32> to vector<16x256xf32>
    %84 = arith.subf %82, %83 : vector<16x256xf32>
    %85 = math.absf %84 : vector<16x256xf32>
    %cst_26 = arith.constant 1.000000e+00 : f32
    %86 = vector.broadcast %cst_26 : f32 to vector<16x256xf32>
    %87 = arith.subf %86, %85 : vector<16x256xf32>
    %cst_27 = arith.constant 0.000000e+00 : f32
    %88 = vector.broadcast %cst_27 : f32 to vector<16x256xf32>
    %89 = arith.maximumf %88, %87 : vector<16x256xf32>
    %90 = vector.broadcast %81 : vector<1x256xf32> to vector<16x256xf32>
    %91 = vector.broadcast %7 : vector<16x1xf32> to vector<16x256xf32>
    %92 = arith.subf %90, %91 : vector<16x256xf32>
    %93 = math.absf %92 : vector<16x256xf32>
    %cst_28 = arith.constant 1.000000e+00 : f32
    %94 = vector.broadcast %cst_28 : f32 to vector<16x256xf32>
    %95 = arith.subf %94, %93 : vector<16x256xf32>
    %cst_29 = arith.constant 0.000000e+00 : f32
    %96 = vector.broadcast %cst_29 : f32 to vector<16x256xf32>
    %97 = arith.maximumf %96, %95 : vector<16x256xf32>
    %98 = vector.extract_strided_slice %5 {offsets = [10, 0], sizes = [1, 256], strides = [1, 1]} : vector<18x256xf32> to vector<1x256xf32>
    %99 = vector.extract_strided_slice %5 {offsets = [11, 0], sizes = [1, 256], strides = [1, 1]} : vector<18x256xf32> to vector<1x256xf32>
    %100 = vector.broadcast %98 : vector<1x256xf32> to vector<16x256xf32>
    %101 = vector.broadcast %6 : vector<16x1xf32> to vector<16x256xf32>
    %102 = arith.subf %100, %101 : vector<16x256xf32>
    %103 = math.absf %102 : vector<16x256xf32>
    %cst_30 = arith.constant 1.000000e+00 : f32
    %104 = vector.broadcast %cst_30 : f32 to vector<16x256xf32>
    %105 = arith.subf %104, %103 : vector<16x256xf32>
    %cst_31 = arith.constant 0.000000e+00 : f32
    %106 = vector.broadcast %cst_31 : f32 to vector<16x256xf32>
    %107 = arith.maximumf %106, %105 : vector<16x256xf32>
    %108 = vector.broadcast %99 : vector<1x256xf32> to vector<16x256xf32>
    %109 = vector.broadcast %7 : vector<16x1xf32> to vector<16x256xf32>
    %110 = arith.subf %108, %109 : vector<16x256xf32>
    %111 = math.absf %110 : vector<16x256xf32>
    %cst_32 = arith.constant 1.000000e+00 : f32
    %112 = vector.broadcast %cst_32 : f32 to vector<16x256xf32>
    %113 = arith.subf %112, %111 : vector<16x256xf32>
    %cst_33 = arith.constant 0.000000e+00 : f32
    %114 = vector.broadcast %cst_33 : f32 to vector<16x256xf32>
    %115 = arith.maximumf %114, %113 : vector<16x256xf32>
    %116 = vector.extract_strided_slice %5 {offsets = [12, 0], sizes = [1, 256], strides = [1, 1]} : vector<18x256xf32> to vector<1x256xf32>
    %117 = vector.extract_strided_slice %5 {offsets = [13, 0], sizes = [1, 256], strides = [1, 1]} : vector<18x256xf32> to vector<1x256xf32>
    %118 = vector.broadcast %116 : vector<1x256xf32> to vector<16x256xf32>
    %119 = vector.broadcast %6 : vector<16x1xf32> to vector<16x256xf32>
    %120 = arith.subf %118, %119 : vector<16x256xf32>
    %121 = math.absf %120 : vector<16x256xf32>
    %cst_34 = arith.constant 1.000000e+00 : f32
    %122 = vector.broadcast %cst_34 : f32 to vector<16x256xf32>
    %123 = arith.subf %122, %121 : vector<16x256xf32>
    %cst_35 = arith.constant 0.000000e+00 : f32
    %124 = vector.broadcast %cst_35 : f32 to vector<16x256xf32>
    %125 = arith.maximumf %124, %123 : vector<16x256xf32>
    %126 = vector.broadcast %117 : vector<1x256xf32> to vector<16x256xf32>
    %127 = vector.broadcast %7 : vector<16x1xf32> to vector<16x256xf32>
    %128 = arith.subf %126, %127 : vector<16x256xf32>
    %129 = math.absf %128 : vector<16x256xf32>
    %cst_36 = arith.constant 1.000000e+00 : f32
    %130 = vector.broadcast %cst_36 : f32 to vector<16x256xf32>
    %131 = arith.subf %130, %129 : vector<16x256xf32>
    %cst_37 = arith.constant 0.000000e+00 : f32
    %132 = vector.broadcast %cst_37 : f32 to vector<16x256xf32>
    %133 = arith.maximumf %132, %131 : vector<16x256xf32>
    %134 = vector.extract_strided_slice %5 {offsets = [14, 0], sizes = [1, 256], strides = [1, 1]} : vector<18x256xf32> to vector<1x256xf32>
    %135 = vector.extract_strided_slice %5 {offsets = [15, 0], sizes = [1, 256], strides = [1, 1]} : vector<18x256xf32> to vector<1x256xf32>
    %136 = vector.broadcast %134 : vector<1x256xf32> to vector<16x256xf32>
    %137 = vector.broadcast %6 : vector<16x1xf32> to vector<16x256xf32>
    %138 = arith.subf %136, %137 : vector<16x256xf32>
    %139 = math.absf %138 : vector<16x256xf32>
    %cst_38 = arith.constant 1.000000e+00 : f32
    %140 = vector.broadcast %cst_38 : f32 to vector<16x256xf32>
    %141 = arith.subf %140, %139 : vector<16x256xf32>
    %cst_39 = arith.constant 0.000000e+00 : f32
    %142 = vector.broadcast %cst_39 : f32 to vector<16x256xf32>
    %143 = arith.maximumf %142, %141 : vector<16x256xf32>
    %144 = vector.broadcast %135 : vector<1x256xf32> to vector<16x256xf32>
    %145 = vector.broadcast %7 : vector<16x1xf32> to vector<16x256xf32>
    %146 = arith.subf %144, %145 : vector<16x256xf32>
    %147 = math.absf %146 : vector<16x256xf32>
    %cst_40 = arith.constant 1.000000e+00 : f32
    %148 = vector.broadcast %cst_40 : f32 to vector<16x256xf32>
    %149 = arith.subf %148, %147 : vector<16x256xf32>
    %cst_41 = arith.constant 0.000000e+00 : f32
    %150 = vector.broadcast %cst_41 : f32 to vector<16x256xf32>
    %151 = arith.maximumf %150, %149 : vector<16x256xf32>
    %152 = vector.extract_strided_slice %5 {offsets = [16, 0], sizes = [1, 256], strides = [1, 1]} : vector<18x256xf32> to vector<1x256xf32>
    %153 = vector.extract_strided_slice %5 {offsets = [17, 0], sizes = [1, 256], strides = [1, 1]} : vector<18x256xf32> to vector<1x256xf32>
    %154 = vector.broadcast %152 : vector<1x256xf32> to vector<16x256xf32>
    %155 = vector.broadcast %6 : vector<16x1xf32> to vector<16x256xf32>
    %156 = arith.subf %154, %155 : vector<16x256xf32>
    %157 = math.absf %156 : vector<16x256xf32>
    %cst_42 = arith.constant 1.000000e+00 : f32
    %158 = vector.broadcast %cst_42 : f32 to vector<16x256xf32>
    %159 = arith.subf %158, %157 : vector<16x256xf32>
    %cst_43 = arith.constant 0.000000e+00 : f32
    %160 = vector.broadcast %cst_43 : f32 to vector<16x256xf32>
    %161 = arith.maximumf %160, %159 : vector<16x256xf32>
    %162 = vector.broadcast %153 : vector<1x256xf32> to vector<16x256xf32>
    %163 = vector.broadcast %7 : vector<16x1xf32> to vector<16x256xf32>
    %164 = arith.subf %162, %163 : vector<16x256xf32>
    %165 = math.absf %164 : vector<16x256xf32>
    %cst_44 = arith.constant 1.000000e+00 : f32
    %166 = vector.broadcast %cst_44 : f32 to vector<16x256xf32>
    %167 = arith.subf %166, %165 : vector<16x256xf32>
    %cst_45 = arith.constant 0.000000e+00 : f32
    %168 = vector.broadcast %cst_45 : f32 to vector<16x256xf32>
    %169 = arith.maximumf %168, %167 : vector<16x256xf32>
    %170 = tpu.concatenate %17, %35, %53, %71, %89, %107, %125, %143, %161 in 1 : vector<16x256xf32>, vector<16x256xf32>, vector<16x256xf32>, vector<16x256xf32>, vector<16x256xf32>, vector<16x256xf32>, vector<16x256xf32>, vector<16x256xf32>, vector<16x256xf32> -> vector<16x2304xf32>
    %c0_46 = arith.constant 0 : index
    %c0_47 = arith.constant 0 : index
    %c0_48 = arith.constant 0 : index
    %171 = vector.load %arg3[%c0_46, %c0_47, %c0_48] : memref<1x48x16xf32, #tpu.memory_space<vmem>>, vector<1x48x16xf32>
    %172 = vector.shape_cast %171 : vector<1x48x16xf32> to vector<48x16xf32>
    %cst_49 = arith.constant dense<0.000000e+00> : vector<48x2304xf32>
    %173 = tpu.matmul %172, %170, %cst_49 {dimension_numbers = #tpu.dot_dimension_numbers<[1], [0], [0], [1], [0, 0, 1, 1], [], []>} : vector<48x16xf32>, vector<16x2304xf32>, vector<48x2304xf32> -> vector<48x2304xf32>
    %174 = vector.extract_strided_slice %173 {offsets = [0, 0], sizes = [48, 256], strides = [1, 1]} : vector<48x2304xf32> to vector<48x256xf32>
    %175 = vector.shape_cast %174 : vector<48x256xf32> to vector<3x16x256xf32>
    %176 = vector.shape_cast %25 : vector<16x256xf32> to vector<1x16x256xf32>
    %177 = vector.broadcast %176 : vector<1x16x256xf32> to vector<3x16x256xf32>
    %178 = arith.mulf %175, %177 : vector<3x16x256xf32>
    %cst_50 = arith.constant dense<0.000000e+00> : vector<3x256xf32>
    %179 = vector.multi_reduction <add>, %178, %cst_50 [1] : vector<3x16x256xf32> to vector<3x256xf32>
    %180 = vector.extract_strided_slice %173 {offsets = [0, 256], sizes = [48, 256], strides = [1, 1]} : vector<48x2304xf32> to vector<48x256xf32>
    %181 = vector.shape_cast %180 : vector<48x256xf32> to vector<3x16x256xf32>
    %182 = vector.shape_cast %43 : vector<16x256xf32> to vector<1x16x256xf32>
    %183 = vector.broadcast %182 : vector<1x16x256xf32> to vector<3x16x256xf32>
    %184 = arith.mulf %181, %183 : vector<3x16x256xf32>
    %cst_51 = arith.constant dense<0.000000e+00> : vector<3x256xf32>
    %185 = vector.multi_reduction <add>, %184, %cst_51 [1] : vector<3x16x256xf32> to vector<3x256xf32>
    %186 = vector.extract_strided_slice %173 {offsets = [0, 512], sizes = [48, 256], strides = [1, 1]} : vector<48x2304xf32> to vector<48x256xf32>
    %187 = vector.shape_cast %186 : vector<48x256xf32> to vector<3x16x256xf32>
    %188 = vector.shape_cast %61 : vector<16x256xf32> to vector<1x16x256xf32>
    %189 = vector.broadcast %188 : vector<1x16x256xf32> to vector<3x16x256xf32>
    %190 = arith.mulf %187, %189 : vector<3x16x256xf32>
    %cst_52 = arith.constant dense<0.000000e+00> : vector<3x256xf32>
    %191 = vector.multi_reduction <add>, %190, %cst_52 [1] : vector<3x16x256xf32> to vector<3x256xf32>
    %192 = vector.extract_strided_slice %173 {offsets = [0, 768], sizes = [48, 256], strides = [1, 1]} : vector<48x2304xf32> to vector<48x256xf32>
    %193 = vector.shape_cast %192 : vector<48x256xf32> to vector<3x16x256xf32>
    %194 = vector.shape_cast %79 : vector<16x256xf32> to vector<1x16x256xf32>
    %195 = vector.broadcast %194 : vector<1x16x256xf32> to vector<3x16x256xf32>
    %196 = arith.mulf %193, %195 : vector<3x16x256xf32>
    %cst_53 = arith.constant dense<0.000000e+00> : vector<3x256xf32>
    %197 = vector.multi_reduction <add>, %196, %cst_53 [1] : vector<3x16x256xf32> to vector<3x256xf32>
    %198 = vector.extract_strided_slice %173 {offsets = [0, 1024], sizes = [48, 256], strides = [1, 1]} : vector<48x2304xf32> to vector<48x256xf32>
    %199 = vector.shape_cast %198 : vector<48x256xf32> to vector<3x16x256xf32>
    %200 = vector.shape_cast %97 : vector<16x256xf32> to vector<1x16x256xf32>
    %201 = vector.broadcast %200 : vector<1x16x256xf32> to vector<3x16x256xf32>
    %202 = arith.mulf %199, %201 : vector<3x16x256xf32>
    %cst_54 = arith.constant dense<0.000000e+00> : vector<3x256xf32>
    %203 = vector.multi_reduction <add>, %202, %cst_54 [1] : vector<3x16x256xf32> to vector<3x256xf32>
    %204 = vector.extract_strided_slice %173 {offsets = [0, 1280], sizes = [48, 256], strides = [1, 1]} : vector<48x2304xf32> to vector<48x256xf32>
    %205 = vector.shape_cast %204 : vector<48x256xf32> to vector<3x16x256xf32>
    %206 = vector.shape_cast %115 : vector<16x256xf32> to vector<1x16x256xf32>
    %207 = vector.broadcast %206 : vector<1x16x256xf32> to vector<3x16x256xf32>
    %208 = arith.mulf %205, %207 : vector<3x16x256xf32>
    %cst_55 = arith.constant dense<0.000000e+00> : vector<3x256xf32>
    %209 = vector.multi_reduction <add>, %208, %cst_55 [1] : vector<3x16x256xf32> to vector<3x256xf32>
    %210 = vector.extract_strided_slice %173 {offsets = [0, 1536], sizes = [48, 256], strides = [1, 1]} : vector<48x2304xf32> to vector<48x256xf32>
    %211 = vector.shape_cast %210 : vector<48x256xf32> to vector<3x16x256xf32>
    %212 = vector.shape_cast %133 : vector<16x256xf32> to vector<1x16x256xf32>
    %213 = vector.broadcast %212 : vector<1x16x256xf32> to vector<3x16x256xf32>
    %214 = arith.mulf %211, %213 : vector<3x16x256xf32>
    %cst_56 = arith.constant dense<0.000000e+00> : vector<3x256xf32>
    %215 = vector.multi_reduction <add>, %214, %cst_56 [1] : vector<3x16x256xf32> to vector<3x256xf32>
    %216 = vector.extract_strided_slice %173 {offsets = [0, 1792], sizes = [48, 256], strides = [1, 1]} : vector<48x2304xf32> to vector<48x256xf32>
    %217 = vector.shape_cast %216 : vector<48x256xf32> to vector<3x16x256xf32>
    %218 = vector.shape_cast %151 : vector<16x256xf32> to vector<1x16x256xf32>
    %219 = vector.broadcast %218 : vector<1x16x256xf32> to vector<3x16x256xf32>
    %220 = arith.mulf %217, %219 : vector<3x16x256xf32>
    %cst_57 = arith.constant dense<0.000000e+00> : vector<3x256xf32>
    %221 = vector.multi_reduction <add>, %220, %cst_57 [1] : vector<3x16x256xf32> to vector<3x256xf32>
    %222 = vector.extract_strided_slice %173 {offsets = [0, 2048], sizes = [48, 256], strides = [1, 1]} : vector<48x2304xf32> to vector<48x256xf32>
    %223 = vector.shape_cast %222 : vector<48x256xf32> to vector<3x16x256xf32>
    %224 = vector.shape_cast %169 : vector<16x256xf32> to vector<1x16x256xf32>
    %225 = vector.broadcast %224 : vector<1x16x256xf32> to vector<3x16x256xf32>
    %226 = arith.mulf %223, %225 : vector<3x16x256xf32>
    %cst_58 = arith.constant dense<0.000000e+00> : vector<3x256xf32>
    %227 = vector.multi_reduction <add>, %226, %cst_58 [1] : vector<3x16x256xf32> to vector<3x256xf32>
    %228 = tpu.concatenate %179, %185, %191, %197, %203, %209, %215, %221, %227 in 0 : vector<3x256xf32>, vector<3x256xf32>, vector<3x256xf32>, vector<3x256xf32>, vector<3x256xf32>, vector<3x256xf32>, vector<3x256xf32>, vector<3x256xf32>, vector<3x256xf32> -> vector<27x256xf32>
    %c0_59 = arith.constant 0 : index
    %c0_60 = arith.constant 0 : index
    %229 = vector.load %arg8[%c0_59, %c0_60] : memref<3x27xf32, #tpu.memory_space<vmem>>, vector<3x27xf32>
    %cst_61 = arith.constant dense<0.000000e+00> : vector<3x256xf32>
    %230 = tpu.matmul %229, %228, %cst_61 {dimension_numbers = #tpu.dot_dimension_numbers<[1], [0], [0], [1], [0, 0, 1, 1], [], []>} : vector<3x27xf32>, vector<27x256xf32>, vector<3x256xf32> -> vector<3x256xf32>
    %c0_62 = arith.constant 0 : index
    %c0_63 = arith.constant 0 : index
    %231 = vector.load %arg9[%c0_62, %c0_63] : memref<3x1xf32, #tpu.memory_space<vmem>>, vector<3x1xf32>
    %232 = vector.broadcast %231 : vector<3x1xf32> to vector<3x256xf32>
    %233 = arith.addf %230, %232 : vector<3x256xf32>
    %c0_64 = arith.constant 0 : index
    %c0_65 = arith.constant 0 : index
    %c0_66 = arith.constant 0 : index
    %234 = vector.load %arg10[%c0_64, %c0_65, %c0_66] : memref<1x3x256xf32, #tpu.memory_space<vmem>>, vector<1x3x256xf32>
    %235 = vector.shape_cast %234 : vector<1x3x256xf32> to vector<3x256xf32>
    %236 = vector.shape_cast %233 : vector<3x256xf32> to vector<1x3x256xf32>
    tpu.vector_store %arg10[%c0_64, %c0_65, %c0_66], %236 {strides = array<i32>} : memref<1x3x256xf32, #tpu.memory_space<vmem>>, vector<1x3x256xf32>,
    return
  }
  func.func @transform_0(%arg0: i32, %arg1: i32) -> (i32, i32, i32) {
    %c0_i32 = arith.constant 0 : i32
    %c0_i32_0 = arith.constant 0 : i32
    return %arg0, %c0_i32, %arg1 : i32, i32, i32
  }
  func.func @transform_1(%arg0: i32, %arg1: i32) -> (i32, i32, i32) {
    %c0_i32 = arith.constant 0 : i32
    %c0_i32_0 = arith.constant 0 : i32
    %c0_i32_1 = arith.constant 0 : i32
    return %arg0, %c0_i32, %c0_i32_0 : i32, i32, i32
  }
  func.func @transform_2(%arg0: i32, %arg1: i32) -> (i32, i32) {
    %c0_i32 = arith.constant 0 : i32
    %c0_i32_0 = arith.constant 0 : i32
    return %c0_i32, %arg1 : i32, i32
  }
  func.func @transform_3(%arg0: i32, %arg1: i32) -> (i32, i32) {
    %c0_i32 = arith.constant 0 : i32
    %c0_i32_0 = arith.constant 0 : i32
    %c0_i32_1 = arith.constant 0 : i32
    return %c0_i32, %c0_i32_0 : i32, i32
  }
  func.func @transform_4(%arg0: i32, %arg1: i32) -> (i32, i32) {
    %c0_i32 = arith.constant 0 : i32
    %c0_i32_0 = arith.constant 0 : i32
    %c0_i32_1 = arith.constant 0 : i32
    return %c0_i32, %c0_i32_0 : i32, i32
  }
  func.func @transform_5(%arg0: i32, %arg1: i32) -> (i32, i32) {
    %c0_i32 = arith.constant 0 : i32
    %c0_i32_0 = arith.constant 0 : i32
    %c0_i32_1 = arith.constant 0 : i32
    return %c0_i32, %c0_i32_0 : i32, i32
  }
  func.func @transform_6(%arg0: i32, %arg1: i32) -> (i32, i32) {
    %c0_i32 = arith.constant 0 : i32
    %c0_i32_0 = arith.constant 0 : i32
    %c0_i32_1 = arith.constant 0 : i32
    return %c0_i32, %c0_i32_0 : i32, i32
  }
  func.func @transform_7(%arg0: i32, %arg1: i32) -> (i32, i32) {
    %c0_i32 = arith.constant 0 : i32
    %c0_i32_0 = arith.constant 0 : i32
    %c0_i32_1 = arith.constant 0 : i32
    return %c0_i32, %c0_i32_0 : i32, i32
  }
  func.func @transform_8(%arg0: i32, %arg1: i32) -> (i32, i32, i32) {
    %c0_i32 = arith.constant 0 : i32
    %c0_i32_0 = arith.constant 0 : i32
    return %arg0, %c0_i32, %arg1 : i32, i32, i32
  }
}

</mosaic_0001>

<llo_original>
// kernel: tpu_custom_call.1
$region0: #{tpu_custom_call.1}
  #allocation0 [shape = 'u32[]', space=smem, size = 0x4, offset = 0x4, fixed_abs, tag = 'smem constant byte address 0x4 - core index']
  #allocation1 [shape = 'u32[144,128]{1,0:T(1,128)}', space=vmem, size = 0x12000, scoped, tag = 'internal scratch']
  %s0 = inlined_call_operand.vmem [shape: f32[2,27,256], index: 0, kind: input, shape index: {}]
  %s1 = inlined_call_operand.vmem [shape: f32[2,48,16], index: 1, kind: input, shape index: {}]
  %s2 = inlined_call_operand.vmem [shape: f32[18,256], index: 2, kind: input, shape index: {}]
  %s3 = inlined_call_operand.vmem [shape: f32[16,1], index: 3, kind: input, shape index: {}]
  %s4 = inlined_call_operand.vmem [shape: f32[16,1], index: 4, kind: input, shape index: {}]
  %s5 = inlined_call_operand.vmem [shape: f32[18,27], index: 5, kind: input, shape index: {}]
  %s6 = inlined_call_operand.vmem [shape: f32[3,27], index: 6, kind: input, shape index: {}]
  %s7 = inlined_call_operand.vmem [shape: f32[3,1], index: 7, kind: input, shape index: {}]
  %s8 = inlined_call_operand.vmem [shape: f32[2,3,256], index: 8, kind: output, shape index: {}]
  %s9 = sld [smem:[#allocation0]]
  $region65: #{tpu_custom_call.1} parent=0
    _
  %s11 = ssub.s32 1, %s9
  %s12 = scalar_select 0, %s11, %s9
  loop: start=0, step=1, limit=4
  $region2: #{tpu_custom_call.1} parent=0 // loop_pre_header
    _
  $region3: #{tpu_custom_call.1} parent=0 // loop_header
    %s14 = sphi 0, %s18
    %p15 = scmp.ge.s32.totalorder %s14, 4
    %s21 = sphi 0, %s33
    %s22 = sphi 0, %s29
    %s23 = sphi 0, %s21
    %s24 = sphi 0, %s22
    %s25 = sphi 0, %s23
    %s26 = sphi 0, %s24
    %s38 = sphi 0, %s40
    %s41 = sphi 0, %s38
    %s42 = sphi 0, %s41
    %s58 = sphi 0, %s42
    %s64 = sphi 0, %s66
    %s67 = sphi 0, %s64
    %s68 = sphi 0, %s67
    %s84 = sphi 0, %s68
    %s90 = sphi 0, %s92
    %s93 = sphi 0, %s90
    %s94 = sphi 0, %s93
    %s110 = sphi 0, %s94
    %s114 = sphi 0, %s114
    %s116 = sphi 0, %s114
    %s117 = sphi 0, %s116
    %s131 = sphi 0, %s117
    %s135 = sphi 0, %s135
    %s137 = sphi 0, %s135
    %s138 = sphi 0, %s137
    %s152 = sphi 0, %s138
    %s156 = sphi 0, %s156
    %s158 = sphi 0, %s156
    %s159 = sphi 0, %s158
    %s173 = sphi 0, %s159
    %s177 = sphi 0, %s177
    %s179 = sphi 0, %s177
    %s180 = sphi 0, %s179
    %s194 = sphi 0, %s180
    %s198 = sphi 0, %s198
    %s200 = sphi 0, %s198
    %s201 = sphi 0, %s200
    %s215 = sphi 0, %s201
    %s223 = sphi 0, %s225
    %s226 = sphi 0, %s223
    %s227 = sphi 0, %s226
    %s243 = sphi 0, %s227
  $region4: #{tpu_custom_call.1} parent=0 // loop_header_branch
    %17 = sbr.rel (%p15) target = $region8
  $region5: #{tpu_custom_call.1} parent=0 // loop_body
    %s19 = ssub.s32 %s14, 1
    %s20 = ssub.s32 %s14, 2
    %s27 = sadd.s32 1, %s22
    %p28 = scmp.ge.s32.totalorder %s27, 1
    %s29 = scalar_select %p28, 0, %s27
    %s30 = sadd.s32 1, %s21
    %s31 = scalar_select %p28, %s30, %s21
    %p32 = scmp.ge.s32.totalorder %s31, 2
    %s33 = scalar_select %p32, 0, %s31
    %s34 = ssub.s32 %s21, %s33
    %s35 = ssub.s32 %s22, %s29
    %s36 = sor.u32 %s34, %s35
    %p37 = scmp.eq.s32.totalorder %s36, 0
    %s39 = sadd.s32 %s38, 1
    %s40 = scalar_select %p37, %s38, %s39
    %p43 = pneg %p37
    %p44 = scmp.eq.s32.totalorder %s14, 1
    %p45 = por %p43, %p44
    %p46 = scmp.ne.s32.totalorder %s38, %s41
    %p47 = scmp.eq.s32.totalorder %s14, 0
    %p48 = por %p46, %p47
    %p49 = scmp.ne.s32.totalorder %s38, %s41
    %p50 = scmp.eq.s32.totalorder %s19, 1
    %p51 = por %p49, %p50
    %p52 = scmp.ne.s32.totalorder %s41, %s42
    %p53 = scmp.eq.s32.totalorder %s19, 0
    %p54 = por %p52, %p53
    %p55 = scmp.ne.s32.totalorder %s41, %s42
    %p56 = scmp.eq.s32.totalorder %s20, 1
    %p57 = por %p55, %p56
    %p59 = scmp.ne.s32.totalorder %s42, %s58
    %p60 = scmp.eq.s32.totalorder %s20, 0
    %p61 = por %p59, %p60
    %s62 = ssub.s32 %s21, %s33
    %p63 = scmp.eq.s32.totalorder %s62, 0
    %s65 = sadd.s32 %s64, 1
    %s66 = scalar_select %p63, %s64, %s65
    %p69 = pneg %p63
    %p70 = scmp.eq.s32.totalorder %s14, 1
    %p71 = por %p69, %p70
    %p72 = scmp.ne.s32.totalorder %s64, %s67
    %p73 = scmp.eq.s32.totalorder %s14, 0
    %p74 = por %p72, %p73
    %p75 = scmp.ne.s32.totalorder %s64, %s67
    %p76 = scmp.eq.s32.totalorder %s19, 1
    %p77 = por %p75, %p76
    %p78 = scmp.ne.s32.totalorder %s67, %s68
    %p79 = scmp.eq.s32.totalorder %s19, 0
    %p80 = por %p78, %p79
    %p81 = scmp.ne.s32.totalorder %s67, %s68
    %p82 = scmp.eq.s32.totalorder %s20, 1
    %p83 = por %p81, %p82
    %p85 = scmp.ne.s32.totalorder %s68, %s84
    %p86 = scmp.eq.s32.totalorder %s20, 0
    %p87 = por %p85, %p86
    %s88 = ssub.s32 %s22, %s29
    %p89 = scmp.eq.s32.totalorder %s88, 0
    %s91 = sadd.s32 %s90, 1
    %s92 = scalar_select %p89, %s90, %s91
    %p95 = pneg %p89
    %p96 = scmp.eq.s32.totalorder %s14, 1
    %p97 = por %p95, %p96
    %p98 = scmp.ne.s32.totalorder %s90, %s93
    %p99 = scmp.eq.s32.totalorder %s14, 0
    %p100 = por %p98, %p99
    %p101 = scmp.ne.s32.totalorder %s90, %s93
    %p102 = scmp.eq.s32.totalorder %s19, 1
    %p103 = por %p101, %p102
    %p104 = scmp.ne.s32.totalorder %s93, %s94
    %p105 = scmp.eq.s32.totalorder %s19, 0
    %p106 = por %p104, %p105
    %p107 = scmp.ne.s32.totalorder %s93, %s94
    %p108 = scmp.eq.s32.totalorder %s20, 1
    %p109 = por %p107, %p108
    %p111 = scmp.ne.s32.totalorder %s94, %s110
    %p112 = scmp.eq.s32.totalorder %s20, 0
    %p113 = por %p111, %p112
    %s115 = sadd.s32 %s114, 1
    %p118 = scmp.eq.s32.totalorder %s14, 1
    %p119 = scmp.ne.s32.totalorder %s114, %s116
    %p120 = scmp.eq.s32.totalorder %s14, 0
    %p121 = por %p119, %p120
    %p122 = scmp.ne.s32.totalorder %s114, %s116
    %p123 = scmp.eq.s32.totalorder %s19, 1
    %p124 = por %p122, %p123
    %p125 = scmp.ne.s32.totalorder %s116, %s117
    %p126 = scmp.eq.s32.totalorder %s19, 0
    %p127 = por %p125, %p126
    %p128 = scmp.ne.s32.totalorder %s116, %s117
    %p129 = scmp.eq.s32.totalorder %s20, 1
    %p130 = por %p128, %p129
    %p132 = scmp.ne.s32.totalorder %s117, %s131
    %p133 = scmp.eq.s32.totalorder %s20, 0
    %p134 = por %p132, %p133
    %s136 = sadd.s32 %s135, 1
    %p139 = scmp.eq.s32.totalorder %s14, 1
    %p140 = scmp.ne.s32.totalorder %s135, %s137
    %p141 = scmp.eq.s32.totalorder %s14, 0
    %p142 = por %p140, %p141
    %p143 = scmp.ne.s32.totalorder %s135, %s137
    %p144 = scmp.eq.s32.totalorder %s19, 1
    %p145 = por %p143, %p144
    %p146 = scmp.ne.s32.totalorder %s137, %s138
    %p147 = scmp.eq.s32.totalorder %s19, 0
    %p148 = por %p146, %p147
    %p149 = scmp.ne.s32.totalorder %s137, %s138
    %p150 = scmp.eq.s32.totalorder %s20, 1
    %p151 = por %p149, %p150
    %p153 = scmp.ne.s32.totalorder %s138, %s152
    %p154 = scmp.eq.s32.totalorder %s20, 0
    %p155 = por %p153, %p154
    %s157 = sadd.s32 %s156, 1
    %p160 = scmp.eq.s32.totalorder %s14, 1
    %p161 = scmp.ne.s32.totalorder %s156, %s158
    %p162 = scmp.eq.s32.totalorder %s14, 0
    %p163 = por %p161, %p162
    %p164 = scmp.ne.s32.totalorder %s156, %s158
    %p165 = scmp.eq.s32.totalorder %s19, 1
    %p166 = por %p164, %p165
    %p167 = scmp.ne.s32.totalorder %s158, %s159
    %p168 = scmp.eq.s32.totalorder %s19, 0
    %p169 = por %p167, %p168
    %p170 = scmp.ne.s32.totalorder %s158, %s159
    %p171 = scmp.eq.s32.totalorder %s20, 1
    %p172 = por %p170, %p171
    %p174 = scmp.ne.s32.totalorder %s159, %s173
    %p175 = scmp.eq.s32.totalorder %s20, 0
    %p176 = por %p174, %p175
    %s178 = sadd.s32 %s177, 1
    %p181 = scmp.eq.s32.totalorder %s14, 1
    %p182 = scmp.ne.s32.totalorder %s177, %s179
    %p183 = scmp.eq.s32.totalorder %s14, 0
    %p184 = por %p182, %p183
    %p185 = scmp.ne.s32.totalorder %s177, %s179
    %p186 = scmp.eq.s32.totalorder %s19, 1
    %p187 = por %p185, %p186
    %p188 = scmp.ne.s32.totalorder %s179, %s180
    %p189 = scmp.eq.s32.totalorder %s19, 0
    %p190 = por %p188, %p189
    %p191 = scmp.ne.s32.totalorder %s179, %s180
    %p192 = scmp.eq.s32.totalorder %s20, 1
    %p193 = por %p191, %p192
    %p195 = scmp.ne.s32.totalorder %s180, %s194
    %p196 = scmp.eq.s32.totalorder %s20, 0
    %p197 = por %p195, %p196
    %s199 = sadd.s32 %s198, 1
    %p202 = scmp.eq.s32.totalorder %s14, 1
    %p203 = scmp.ne.s32.totalorder %s198, %s200
    %p204 = scmp.eq.s32.totalorder %s14, 0
    %p205 = por %p203, %p204
    %p206 = scmp.ne.s32.totalorder %s198, %s200
    %p207 = scmp.eq.s32.totalorder %s19, 1
    %p208 = por %p206, %p207
    %p209 = scmp.ne.s32.totalorder %s200, %s201
    %p210 = scmp.eq.s32.totalorder %s19, 0
    %p211 = por %p209, %p210
    %p212 = scmp.ne.s32.totalorder %s200, %s201
    %p213 = scmp.eq.s32.totalorder %s20, 1
    %p214 = por %p212, %p213
    %p216 = scmp.ne.s32.totalorder %s201, %s215
    %p217 = scmp.eq.s32.totalorder %s20, 0
    %p218 = por %p216, %p217
    %s219 = ssub.s32 %s21, %s33
    %s220 = ssub.s32 %s22, %s29
    %s221 = sor.u32 %s219, %s220
    %p222 = scmp.eq.s32.totalorder %s221, 0
    %s224 = sadd.s32 %s223, 1
    %s225 = scalar_select %p222, %s223, %s224
    %p228 = pneg %p222
    %p229 = scmp.eq.s32.totalorder %s14, 1
    %p230 = por %p228, %p229
    %p231 = scmp.ne.s32.totalorder %s223, %s226
    %p232 = scmp.eq.s32.totalorder %s14, 0
    %p233 = por %p231, %p232
    %p234 = scmp.ne.s32.totalorder %s223, %s226
    %p235 = scmp.eq.s32.totalorder %s19, 1
    %p236 = por %p234, %p235
    %p237 = scmp.ne.s32.totalorder %s226, %s227
    %p238 = scmp.eq.s32.totalorder %s19, 0
    %p239 = por %p237, %p238
    %p240 = scmp.ne.s32.totalorder %s226, %s227
    %p241 = scmp.eq.s32.totalorder %s20, 1
    %p242 = por %p240, %p241
    %p244 = scmp.ne.s32.totalorder %s227, %s243
    %p245 = scmp.eq.s32.totalorder %s20, 0
    %p246 = por %p244, %p245
    %p247 = scmp.le.s32.totalorder 1, %s14
    %p248 = scmp.lt.s32.totalorder %s14, 3
    %p249 = pnand %p247, %p248
    %p250 = pneg %p249
    // Predicated region
    $region9: #{tpu_custom_call.1} parent=5 // pred_check
      _
    $region10: #{tpu_custom_call.1} parent=5 // pred_check_branch
      %252 = sbr.rel (%p249) target = $region12
    $region11: #{tpu_custom_call.1} parent=5 // pred_region
      %s253 = ssub.s32 %s14, 1
      // Predicated region
      $region13: #{tpu_custom_call.1} parent=11 // pred_check
        %p254 = pneg %p106
      $region14: #{tpu_custom_call.1} parent=11 // pred_check_branch
        %256 = sbr.rel (%p254) target = $region16
      $region15: #{tpu_custom_call.1} parent=11 // pred_region
        %s257 = smul.u32 2, %s24
        %p258 = scmp.lt.s32.totalorder %s257, 1
        %s259 = scalar_select %p258, %s257, 1
        %s260 = smul.addr %s259, 8
        %s261 = scalar_lea.vmem %s2, %s260
        %s262 = smul.u32 2, %s24
      $region16: #{tpu_custom_call.1} parent=11 // pred_fallthru
        _
      // Predicated region
      $region17: #{tpu_custom_call.1} parent=11 // pred_check
        %p263 = pneg %p127
      $region18: #{tpu_custom_call.1} parent=11 // pred_check_branch
        %265 = sbr.rel (%p263) target = $region20
      $region19: #{tpu_custom_call.1} parent=11 // pred_region
        _
      $region20: #{tpu_custom_call.1} parent=11 // pred_fallthru
        _
      // Predicated region
      $region21: #{tpu_custom_call.1} parent=11 // pred_check
        %p266 = pneg %p148
      $region22: #{tpu_custom_call.1} parent=11 // pred_check_branch
        %268 = sbr.rel (%p266) target = $region24
      $region23: #{tpu_custom_call.1} parent=11 // pred_region
        _
      $region24: #{tpu_custom_call.1} parent=11 // pred_fallthru
        _
      // Predicated region
      $region25: #{tpu_custom_call.1} parent=11 // pred_check
        %p269 = pneg %p169
      $region26: #{tpu_custom_call.1} parent=11 // pred_check_branch
        %271 = sbr.rel (%p269) target = $region28
      $region27: #{tpu_custom_call.1} parent=11 // pred_region
        _
      $region28: #{tpu_custom_call.1} parent=11 // pred_fallthru
        _
      // Predicated region
      $region29: #{tpu_custom_call.1} parent=11 // pred_check
        %p272 = pneg %p190
      $region30: #{tpu_custom_call.1} parent=11 // pred_check_branch
        %274 = sbr.rel (%p272) target = $region32
      $region31: #{tpu_custom_call.1} parent=11 // pred_region
        _
      $region32: #{tpu_custom_call.1} parent=11 // pred_fallthru
        _
      // Predicated region
      $region33: #{tpu_custom_call.1} parent=11 // pred_check
        %p275 = pneg %p211
      $region34: #{tpu_custom_call.1} parent=11 // pred_check_branch
        %277 = sbr.rel (%p275) target = $region36
      $region35: #{tpu_custom_call.1} parent=11 // pred_region
        _
      $region36: #{tpu_custom_call.1} parent=11 // pred_fallthru
        _
    $region12: #{tpu_custom_call.1} parent=5 // pred_fallthru
      _
    %p278 = scmp.lt.s32.totalorder %s14, 2
    // Predicated region
    $region37: #{tpu_custom_call.1} parent=5 // pred_check
      %p279 = pneg %p278
    $region38: #{tpu_custom_call.1} parent=5 // pred_check_branch
      %281 = sbr.rel (%p279) target = $region40
    $region39: #{tpu_custom_call.1} parent=5 // pred_region
      // Predicated region
      $region41: #{tpu_custom_call.1} parent=39 // pred_check
        %p282 = pneg %p48
      $region42: #{tpu_custom_call.1} parent=39 // pred_check_branch
        %284 = sbr.rel (%p282) target = $region44
      $region43: #{tpu_custom_call.1} parent=39 // pred_region
        %s285 = smul.u32 2, %s22
        %p286 = scmp.lt.s32.totalorder %s21, 1
        %s287 = scalar_select %p286, %s21, 1
        %p288 = scmp.lt.s32.totalorder %s285, 1
        %s289 = scalar_select %p288, %s285, 1
        %s290 = smul.addr %s287, 8
        %s291 = sadd.s32 %s289, %s290
        %s292 = smul.addr %s291, 8
        %s293 = scalar_lea.vmem %s0, %s292
        %s294 = smul.u32 2, %s22
      $region44: #{tpu_custom_call.1} parent=39 // pred_fallthru
        _
      // Predicated region
      $region45: #{tpu_custom_call.1} parent=39 // pred_check
        %p295 = pneg %p74
      $region46: #{tpu_custom_call.1} parent=39 // pred_check_branch
        %297 = sbr.rel (%p295) target = $region48
      $region47: #{tpu_custom_call.1} parent=39 // pred_region
        %p298 = scmp.lt.s32.totalorder %s21, 1
        %s299 = scalar_select %p298, %s21, 1
        %s300 = smul.addr %s299, 6
        %s301 = smul.addr %s300, 8
        %s302 = scalar_lea.vmem %s1, %s301
      $region48: #{tpu_custom_call.1} parent=39 // pred_fallthru
        _
    $region40: #{tpu_custom_call.1} parent=5 // pred_fallthru
      _
    %p303 = scmp.le.s32.totalorder 1, %s14
    %p304 = scmp.lt.s32.totalorder %s14, 3
    %p305 = pnand %p303, %p304
    %p306 = pneg %p305
    // Predicated region
    $region49: #{tpu_custom_call.1} parent=5 // pred_check
      _
    $region50: #{tpu_custom_call.1} parent=5 // pred_check_branch
      %308 = sbr.rel (%p305) target = $region52
    $region51: #{tpu_custom_call.1} parent=5 // pred_region
      %s309 = ssub.s32 %s14, 1
      %s310 = smul.u32 2, %s24
      %p311 = scmp.lt.s32.totalorder %s23, 1
      %s312 = scalar_select %p311, %s23, 1
      %p313 = scmp.lt.s32.totalorder %s310, 1
      %s314 = scalar_select %p313, %s310, 1
      %s315 = smul.addr %s312, 8
      %s316 = sadd.s32 %s314, %s315
      %s317 = smul.addr %s316, 8
      %s318 = scalar_lea.vmem %s0, %s317
      %p319 = pneg %p54
      %p320 = pneg %p51
      %p321 = scmp.lt.s32.totalorder %s23, 1
      %s322 = scalar_select %p321, %s23, 1
      %s323 = smul.addr %s322, 6
      %s324 = smul.addr %s323, 8
      %s325 = scalar_lea.vmem %s1, %s324
      %p326 = pneg %p80
      %p327 = pneg %p77
      %s328 = smul.u32 2, %s24
      %p329 = scmp.lt.s32.totalorder %s328, 1
      %s330 = scalar_select %p329, %s328, 1
      %s331 = smul.addr %s330, 8
      %s332 = scalar_lea.vmem %s2, %s331
      %p333 = pneg %p106
      %p334 = pneg %p103
      %p335 = pneg %p127
      %p336 = pneg %p124
      %p337 = pneg %p148
      %p338 = pneg %p145
      %p339 = pneg %p169
      %p340 = pneg %p166
      %p341 = pneg %p190
      %p342 = pneg %p187
      %p343 = pneg %p211
      %p344 = pneg %p208
      %p345 = pneg %p239
      %p346 = pneg %p236
      %s347 = smul.u32 2, %s24
      %p348 = scmp.lt.s32.totalorder %s23, 1
      %s349 = scalar_select %p348, %s23, 1
      %p350 = scmp.lt.s32.totalorder %s347, 1
      %s351 = scalar_select %p350, %s347, 1
      %s352 = smul.addr %s349, 2
      %s353 = sadd.s32 %s351, %s352
      %s354 = smul.addr %s353, 4
      %s355 = scalar_lea.vmem %s8, %s354
      %s356 = smul.u32 2, %s24
      %p357 = scmp.lt.s32.totalorder %s23, 1
      %s358 = scalar_select %p357, %s23, 1
      %p359 = scmp.lt.s32.totalorder %s356, 1
      %s360 = scalar_select %p359, %s356, 1
      %s361 = smul.addr %s358, 8
      %s362 = sadd.s32 %s360, %s361
      %s363 = smul.addr %s362, 8
      %s364 = scalar_lea.vmem %s0, %s363
      %s365 = smul.u32 2, %s24
      %p366 = scmp.lt.s32.totalorder %s23, 1
      %s367 = scalar_select %p366, %s23, 1
      %s368 = smul.addr %s367, 6
      %s369 = smul.addr %s368, 8
      %s370 = scalar_lea.vmem %s1, %s369
      %s371 = smul.u32 2, %s24
      %p372 = scmp.lt.s32.totalorder %s371, 1
      %s373 = scalar_select %p372, %s371, 1
      %s374 = smul.addr %s373, 8
      %s375 = scalar_lea.vmem %s2, %s374
      %s376 = smul.u32 2, %s24
      %s377 = smul.u32 2, %s24
      %p378 = scmp.lt.s32.totalorder %s23, 1
      %s379 = scalar_select %p378, %s23, 1
      %p380 = scmp.lt.s32.totalorder %s377, 1
      %s381 = scalar_select %p380, %s377, 1
      %s382 = smul.addr %s379, 2
      %s383 = sadd.s32 %s381, %s382
      %s384 = smul.addr %s383, 4
      %s385 = scalar_lea.vmem %s8, %s384
      %s386 = smul.u32 2, %s24
      %v387 = vld [vmem:[%s5] sm:$0xff]
      %v388 = vld [vmem:[%s5 + $0x8] sm:$0xff]
      %v389 = vld [vmem:[%s5 + $0x10] sm:$0x3]
      %v390 = vld [vmem:[%s364] sm:$0xff]
      %v391 = vld [vmem:[%s364 + $0x8] sm:$0xff]
      %v392 = vld [vmem:[%s364 + $0x10] sm:$0xff]
      %v393 = vld [vmem:[%s364 + $0x18] sm:$0xff]
      %v394 = vld [vmem:[%s364 + $0x20] sm:$0xff]
      %v395 = vld [vmem:[%s364 + $0x28] sm:$0xff]
      %v396 = vld [vmem:[%s364 + $0x30] sm:$0x7]
      %v397 = vld [vmem:[%s364 + $0x38] sm:$0x7]
      %v398 = vld [vmem:[%s375] sm:$0xff]
      %v399 = vld [vmem:[%s375 + $0x8] sm:$0xff]
      %v400 = vld [vmem:[%s375 + $0x10] sm:$0xff]
      %v401 = vld [vmem:[%s375 + $0x18] sm:$0xff]
      %v402 = vld [vmem:[%s375 + $0x20] sm:$0x3]
      %v403 = vld [vmem:[%s375 + $0x28] sm:$0x3]
      %vm404 = vcmask 220160
      %v406 = vsel %vm404, %v387, 0
      %v409 = vsel %vm404, %v388, 0
      %v412 = vsel %vm404, %v389, 0
      %vm414 = vcmask 1042432
      %v416 = vsel %vm414, %v396, 0
      %v419 = vsel %vm414, %v397, 0
      %421 = vmatprep.subr.mxu0 %v391
      %422 = vmatpush1.msra.mxu0 %v390
      %423 = vmatprep.subr.mxu0 %v393
      %424 = vmatpush1.msra.mxu0 %v392
      %425 = vmatprep.subr.mxu0 %v395
      %426 = vmatpush1.msra.mxu0 %v394
      %427 = vmatprep.subr.mxu0 %v419
      %428 = vmatpush1.msra.mxu0 %v416
      %429 = vmatprep.subr.mxu0 0.0
      %430 = vmatpush1.msra.mxu0 0.0
      %431 = vmatprep.subr.mxu0 0.0
      %432 = vmatpush1.msra.mxu0 0.0
      %433 = vmatprep.subr.mxu0 0.0
      %434 = vmatpush1.msra.mxu0 0.0
      %435 = vmatprep.subr.mxu0 0.0
      %436 = vmatpush1.msra.mxu0 0.0
      %437 = vmatprep.subr.mxu0 0.0
      %438 = vmatpush1.msra.mxu0 0.0
      %439 = vmatprep.subr.mxu0 0.0
      %440 = vmatpush1.msra.mxu0 0.0
      %441 = vmatprep.subr.mxu0 0.0
      %442 = vmatpush1.msra.mxu0 0.0
      %443 = vmatprep.subr.mxu0 0.0
      %444 = vmatpush1.msra.mxu0 0.0
      %445 = vmatprep.subr.mxu0 0.0
      %446 = vmatpush1.msra.mxu0 0.0
      %447 = vmatprep.subr.mxu0 0.0
      %448 = vmatpush1.msra.mxu0 0.0
      %449 = vmatprep.subr.mxu0 0.0
      %450 = vmatpush1.msra.mxu0 0.0
      %451 = vmatprep.subr.mxu0 0.0
      %452 = vmatpush1.msra.mxu0 0.0
      %453 = vmatprep.subr.mxu0 0.0
      %454 = vmatpush1.msra.mxu0 0.0
      %455 = vmatprep.subr.mxu0 0.0
      %456 = vmatpush1.msra.mxu0 0.0
      %457 = vmatprep.subr.mxu0 0.0
      %458 = vmatpush1.msra.mxu0 0.0
      %459 = vmatprep.subr.mxu0 0.0
      %460 = vmatpush1.msra.mxu0 0.0
      %461 = vmatprep.subr.mxu0 0.0
      %462 = vmatpush1.msra.mxu0 0.0
      %463 = vmatprep.subr.mxu0 0.0
      %464 = vmatpush1.msra.mxu0 0.0
      %465 = vmatprep.subr.mxu0 0.0
      %466 = vmatpush1.msra.mxu0 0.0
      %467 = vmatprep.subr.mxu0 0.0
      %468 = vmatpush1.msra.mxu0 0.0
      %469 = vmatprep.subr.mxu0 0.0
      %470 = vmatpush1.msra.mxu0 0.0
      %471 = vmatprep.subr.mxu0 0.0
      %472 = vmatpush1.msra.mxu0 0.0
      %473 = vmatprep.subr.mxu0 0.0
      %474 = vmatpush1.msra.mxu0 0.0
      %475 = vmatprep.subr.mxu0 0.0
      %476 = vmatpush1.msra.mxu0 0.0
      %477 = vmatprep.subr.mxu0 0.0
      %478 = vmatpush1.msra.mxu0 0.0
      %479 = vmatprep.subr.mxu0 0.0
      %480 = vmatpush1.msra.mxu0 0.0
      %481 = vmatprep.subr.mxu0 0.0
      %482 = vmatpush1.msra.mxu0 0.0
      %483 = vmatprep.subr.mxu0 0.0
      %484 = vmatpush1.msra.mxu0 0.0
      %485 = vmatprep.mubr.f32.mxu0 0.0
      %486 = vmatmul.mubr.f32.gmra.mrb[0].mxu0 %v406
      %v487 = vpop.f32.mrb[0].mxu0
      %v488 = vadd.f32 %v398, %v487
      %v489 = vpop.f32.mrb[0].mxu0
      %v490 = vadd.f32 %v399, %v489
      %491 = vmatprep.mubr.f32.mxu0 0.0
      %492 = vmatmul.mubr.f32.gmra.mrb[0].mxu0 %v409
      %v493 = vpop.f32.mrb[0].mxu0
      %v494 = vadd.f32 %v400, %v493
      %v495 = vpop.f32.mrb[0].mxu0
      %v496 = vadd.f32 %v401, %v495
      %497 = vmatprep.mubr.f32.mxu0 0.0
      %498 = vmatmul.mubr.f32.gmra.mrb[0].mxu0 %v412
      %v499 = vpop.f32.mrb[0].mxu0
      %v500 = vadd.f32 %v402, %v499
      %v501 = vpop.f32.mrb[0].mxu0
      %v502 = vadd.f32 %v403, %v501
      %503 = vdwg.mxu0
      %v504 = vld [vmem:[%s3] sm:$0xff]
      %v505 = vld [vmem:[%s3 + $0x8] sm:$0xff]
      %v506 = vld [vmem:[%s4] sm:$0xff]
      %v507 = vld [vmem:[%s4 + $0x8] sm:$0xff]
      %v508 = vlaneseq
      %v509 = vshrl.u32 %v508, 7
      %v510 = vsub.s32 0, %v509
      %v511 = vrot.slane %v488, %v510
      %v512 = vlaneseq
      %v513 = vshrl.u32 %v512, 7
      %v514 = vsub.s32 0, %v513
      %v515 = vrot.slane %v490, %v514
      %517 = vset.pattern.permute.xlu0 0
      %518 = vperm.xlu0 %517, %v504
      %v519 = vpop.permute.xlu0 %518
      %522 = vset.pattern.permute.xlu0 0
      %523 = vperm.xlu0 %522, %v505
      %v524 = vpop.permute.xlu0 %523
      %v526 = vsub.f32 %v511, %v519
      %v527 = vsub.f32 %v515, %v519
      %v528 = vsub.f32 %v511, %v524
      %v529 = vsub.f32 %v515, %v524
      %v530 = vand.u32 2147483647, %v526
      %v531 = vand.u32 2147483647, %v527
      %v532 = vand.u32 2147483647, %v528
      %v533 = vand.u32 2147483647, %v529
      %v534 = vsub.f32 1.0, %v530
      %v535 = vsub.f32 1.0, %v531
      %v536 = vsub.f32 1.0, %v532
      %v537 = vsub.f32 1.0, %v533
      %v538 = vmax.f32 %v534, 0.0
      %v539 = vmax.f32 %v535, 0.0
      %v540 = vmax.f32 %v536, 0.0
      %v541 = vmax.f32 %v537, 0.0
      %v542 = vlaneseq
      %v543 = vshrl.u32 %v542, 7
      %v544 = vsub.s32 1, %v543
      %v545 = vrot.slane %v488, %v544
      %v546 = vlaneseq
      %v547 = vshrl.u32 %v546, 7
      %v548 = vsub.s32 1, %v547
      %v549 = vrot.slane %v490, %v548
      %551 = vset.pattern.permute.xlu0 0
      %552 = vperm.xlu0 %551, %v506
      %v553 = vpop.permute.xlu0 %552
      %556 = vset.pattern.permute.xlu0 0
      %557 = vperm.xlu0 %556, %v507
      %v558 = vpop.permute.xlu0 %557
      %v560 = vsub.f32 %v545, %v553
      %v561 = vsub.f32 %v549, %v553
      %v562 = vsub.f32 %v545, %v558
      %v563 = vsub.f32 %v549, %v558
      %v564 = vand.u32 2147483647, %v560
      %v565 = vand.u32 2147483647, %v561
      %v566 = vand.u32 2147483647, %v562
      %v567 = vand.u32 2147483647, %v563
      %v568 = vsub.f32 1.0, %v564
      %v569 = vsub.f32 1.0, %v565
      %v570 = vsub.f32 1.0, %v566
      %v571 = vsub.f32 1.0, %v567
      %v572 = vmax.f32 %v568, 0.0
      %v573 = vmax.f32 %v569, 0.0
      %v574 = vmax.f32 %v570, 0.0
      %v575 = vmax.f32 %v571, 0.0
      %v576 = vlaneseq
      %v577 = vshrl.u32 %v576, 7
      %v578 = vsub.s32 2, %v577
      %v579 = vrot.slane %v488, %v578
      %v580 = vlaneseq
      %v581 = vshrl.u32 %v580, 7
      %v582 = vsub.s32 2, %v581
      %v583 = vrot.slane %v490, %v582
      %v584 = vsub.f32 %v579, %v519
      %v585 = vsub.f32 %v583, %v519
      %v586 = vsub.f32 %v579, %v524
      %v587 = vsub.f32 %v583, %v524
      %v588 = vand.u32 2147483647, %v584
      %v589 = vand.u32 2147483647, %v585
      %v590 = vand.u32 2147483647, %v586
      %v591 = vand.u32 2147483647, %v587
      %v592 = vsub.f32 1.0, %v588
      %v593 = vsub.f32 1.0, %v589
      %v594 = vsub.f32 1.0, %v590
      %v595 = vsub.f32 1.0, %v591
      %v596 = vmax.f32 %v592, 0.0
      %v597 = vmax.f32 %v593, 0.0
      %v598 = vmax.f32 %v594, 0.0
      %v599 = vmax.f32 %v595, 0.0
      %v600 = vlaneseq
      %v601 = vshrl.u32 %v600, 7
      %v602 = vsub.s32 3, %v601
      %v603 = vrot.slane %v488, %v602
      %v604 = vlaneseq
      %v605 = vshrl.u32 %v604, 7
      %v606 = vsub.s32 3, %v605
      %v607 = vrot.slane %v490, %v606
      %v608 = vsub.f32 %v603, %v553
      %v609 = vsub.f32 %v607, %v553
      %v610 = vsub.f32 %v603, %v558
      %v611 = vsub.f32 %v607, %v558
      %v612 = vand.u32 2147483647, %v608
      %v613 = vand.u32 2147483647, %v609
      %v614 = vand.u32 2147483647, %v610
      %v615 = vand.u32 2147483647, %v611
      %v616 = vsub.f32 1.0, %v612
      %v617 = vsub.f32 1.0, %v613
      %v618 = vsub.f32 1.0, %v614
      %v619 = vsub.f32 1.0, %v615
      %v620 = vmax.f32 %v616, 0.0
      %v621 = vmax.f32 %v617, 0.0
      %v622 = vmax.f32 %v618, 0.0
      %v623 = vmax.f32 %v619, 0.0
      %v624 = vlaneseq
      %v625 = vshrl.u32 %v624, 7
      %v626 = vsub.s32 4, %v625
      %v627 = vrot.slane %v488, %v626
      %v628 = vlaneseq
      %v629 = vshrl.u32 %v628, 7
      %v630 = vsub.s32 4, %v629
      %v631 = vrot.slane %v490, %v630
      %v632 = vsub.f32 %v627, %v519
      %v633 = vsub.f32 %v631, %v519
      %v634 = vsub.f32 %v627, %v524
      %v635 = vsub.f32 %v631, %v524
      %v636 = vand.u32 2147483647, %v632
      %v637 = vand.u32 2147483647, %v633
      %v638 = vand.u32 2147483647, %v634
      %v639 = vand.u32 2147483647, %v635
      %v640 = vsub.f32 1.0, %v636
      %v641 = vsub.f32 1.0, %v637
      %v642 = vsub.f32 1.0, %v638
      %v643 = vsub.f32 1.0, %v639
      %v644 = vmax.f32 %v640, 0.0
      %v645 = vmax.f32 %v641, 0.0
      %v646 = vmax.f32 %v642, 0.0
      %v647 = vmax.f32 %v643, 0.0
      %v648 = vlaneseq
      %v649 = vshrl.u32 %v648, 7
      %v650 = vsub.s32 5, %v649
      %v651 = vrot.slane %v488, %v650
      %v652 = vlaneseq
      %v653 = vshrl.u32 %v652, 7
      %v654 = vsub.s32 5, %v653
      %v655 = vrot.slane %v490, %v654
      %v656 = vsub.f32 %v651, %v553
      %v657 = vsub.f32 %v655, %v553
      %v658 = vsub.f32 %v651, %v558
      %v659 = vsub.f32 %v655, %v558
      %v660 = vand.u32 2147483647, %v656
      %v661 = vand.u32 2147483647, %v657
      %v662 = vand.u32 2147483647, %v658
      %v663 = vand.u32 2147483647, %v659
      %v664 = vsub.f32 1.0, %v660
      %v665 = vsub.f32 1.0, %v661
      %v666 = vsub.f32 1.0, %v662
      %v667 = vsub.f32 1.0, %v663
      %v668 = vmax.f32 %v664, 0.0
      %v669 = vmax.f32 %v665, 0.0
      %v670 = vmax.f32 %v666, 0.0
      %v671 = vmax.f32 %v667, 0.0
      %v672 = vlaneseq
      %v673 = vshrl.u32 %v672, 7
      %v674 = vsub.s32 6, %v673
      %v675 = vrot.slane %v488, %v674
      %v676 = vlaneseq
      %v677 = vshrl.u32 %v676, 7
      %v678 = vsub.s32 6, %v677
      %v679 = vrot.slane %v490, %v678
      %v680 = vsub.f32 %v675, %v519
      %v681 = vsub.f32 %v679, %v519
      %v682 = vsub.f32 %v675, %v524
      %v683 = vsub.f32 %v679, %v524
      %v684 = vand.u32 2147483647, %v680
      %v685 = vand.u32 2147483647, %v681
      %v686 = vand.u32 2147483647, %v682
      %v687 = vand.u32 2147483647, %v683
      %v688 = vsub.f32 1.0, %v684
      %v689 = vsub.f32 1.0, %v685
      %v690 = vsub.f32 1.0, %v686
      %v691 = vsub.f32 1.0, %v687
      %v692 = vmax.f32 %v688, 0.0
      %v693 = vmax.f32 %v689, 0.0
      %v694 = vmax.f32 %v690, 0.0
      %v695 = vmax.f32 %v691, 0.0
      %v696 = vlaneseq
      %v697 = vshrl.u32 %v696, 7
      %v698 = vsub.s32 7, %v697
      %v699 = vrot.slane %v488, %v698
      %v700 = vlaneseq
      %v701 = vshrl.u32 %v700, 7
      %v702 = vsub.s32 7, %v701
      %v703 = vrot.slane %v490, %v702
      %v704 = vsub.f32 %v699, %v553
      %v705 = vsub.f32 %v703, %v553
      %v706 = vsub.f32 %v699, %v558
      %v707 = vsub.f32 %v703, %v558
      %v708 = vand.u32 2147483647, %v704
      %v709 = vand.u32 2147483647, %v705
      %v710 = vand.u32 2147483647, %v706
      %v711 = vand.u32 2147483647, %v707
      %v712 = vsub.f32 1.0, %v708
      %v713 = vsub.f32 1.0, %v709
      %v714 = vsub.f32 1.0, %v710
      %v715 = vsub.f32 1.0, %v711
      %v716 = vmax.f32 %v712, 0.0
      %v717 = vmax.f32 %v713, 0.0
      %v718 = vmax.f32 %v714, 0.0
      %v719 = vmax.f32 %v715, 0.0
      %v720 = vlaneseq
      %v721 = vshrl.u32 %v720, 7
      %v722 = vsub.s32 0, %v721
      %v723 = vrot.slane %v494, %v722
      %v724 = vlaneseq
      %v725 = vshrl.u32 %v724, 7
      %v726 = vsub.s32 0, %v725
      %v727 = vrot.slane %v496, %v726
      %v728 = vsub.f32 %v723, %v519
      %v729 = vsub.f32 %v727, %v519
      %v730 = vsub.f32 %v723, %v524
      %v731 = vsub.f32 %v727, %v524
      %v732 = vand.u32 2147483647, %v728
      %v733 = vand.u32 2147483647, %v729
      %v734 = vand.u32 2147483647, %v730
      %v735 = vand.u32 2147483647, %v731
      %v736 = vsub.f32 1.0, %v732
      %v737 = vsub.f32 1.0, %v733
      %v738 = vsub.f32 1.0, %v734
      %v739 = vsub.f32 1.0, %v735
      %v740 = vmax.f32 %v736, 0.0
      %v741 = vmax.f32 %v737, 0.0
      %v742 = vmax.f32 %v738, 0.0
      %v743 = vmax.f32 %v739, 0.0
      %v744 = vlaneseq
      %v745 = vshrl.u32 %v744, 7
      %v746 = vsub.s32 1, %v745
      %v747 = vrot.slane %v494, %v746
      %v748 = vlaneseq
      %v749 = vshrl.u32 %v748, 7
      %v750 = vsub.s32 1, %v749
      %v751 = vrot.slane %v496, %v750
      %v752 = vsub.f32 %v747, %v553
      %v753 = vsub.f32 %v751, %v553
      %v754 = vsub.f32 %v747, %v558
      %v755 = vsub.f32 %v751, %v558
      %v756 = vand.u32 2147483647, %v752
      %v757 = vand.u32 2147483647, %v753
      %v758 = vand.u32 2147483647, %v754
      %v759 = vand.u32 2147483647, %v755
      %v760 = vsub.f32 1.0, %v756
      %v761 = vsub.f32 1.0, %v757
      %v762 = vsub.f32 1.0, %v758
      %v763 = vsub.f32 1.0, %v759
      %v764 = vmax.f32 %v760, 0.0
      %v765 = vmax.f32 %v761, 0.0
      %v766 = vmax.f32 %v762, 0.0
      %v767 = vmax.f32 %v763, 0.0
      %v768 = vlaneseq
      %v769 = vshrl.u32 %v768, 7
      %v770 = vsub.s32 2, %v769
      %v771 = vrot.slane %v494, %v770
      %v772 = vlaneseq
      %v773 = vshrl.u32 %v772, 7
      %v774 = vsub.s32 2, %v773
      %v775 = vrot.slane %v496, %v774
      %v776 = vsub.f32 %v771, %v519
      %v777 = vsub.f32 %v775, %v519
      %v778 = vsub.f32 %v771, %v524
      %v779 = vsub.f32 %v775, %v524
      %v780 = vand.u32 2147483647, %v776
      %v781 = vand.u32 2147483647, %v777
      %v782 = vand.u32 2147483647, %v778
      %v783 = vand.u32 2147483647, %v779
      %v784 = vsub.f32 1.0, %v780
      %v785 = vsub.f32 1.0, %v781
      %v786 = vsub.f32 1.0, %v782
      %v787 = vsub.f32 1.0, %v783
      %v788 = vmax.f32 %v784, 0.0
      %v789 = vmax.f32 %v785, 0.0
      %v790 = vmax.f32 %v786, 0.0
      %v791 = vmax.f32 %v787, 0.0
      %v792 = vlaneseq
      %v793 = vshrl.u32 %v792, 7
      %v794 = vsub.s32 3, %v793
      %v795 = vrot.slane %v494, %v794
      %v796 = vlaneseq
      %v797 = vshrl.u32 %v796, 7
      %v798 = vsub.s32 3, %v797
      %v799 = vrot.slane %v496, %v798
      %v800 = vsub.f32 %v795, %v553
      %v801 = vsub.f32 %v799, %v553
      %v802 = vsub.f32 %v795, %v558
      %v803 = vsub.f32 %v799, %v558
      %v804 = vand.u32 2147483647, %v800
      %v805 = vand.u32 2147483647, %v801
      %v806 = vand.u32 2147483647, %v802
      %v807 = vand.u32 2147483647, %v803
      %v808 = vsub.f32 1.0, %v804
      %v809 = vsub.f32 1.0, %v805
      %v810 = vsub.f32 1.0, %v806
      %v811 = vsub.f32 1.0, %v807
      %v812 = vmax.f32 %v808, 0.0
      %v813 = vmax.f32 %v809, 0.0
      %v814 = vmax.f32 %v810, 0.0
      %v815 = vmax.f32 %v811, 0.0
      %v816 = vlaneseq
      %v817 = vshrl.u32 %v816, 7
      %v818 = vsub.s32 4, %v817
      %v819 = vrot.slane %v494, %v818
      %v820 = vlaneseq
      %v821 = vshrl.u32 %v820, 7
      %v822 = vsub.s32 4, %v821
      %v823 = vrot.slane %v496, %v822
      %v824 = vsub.f32 %v819, %v519
      %v825 = vsub.f32 %v823, %v519
      %v826 = vsub.f32 %v819, %v524
      %v827 = vsub.f32 %v823, %v524
      %v828 = vand.u32 2147483647, %v824
      %v829 = vand.u32 2147483647, %v825
      %v830 = vand.u32 2147483647, %v826
      %v831 = vand.u32 2147483647, %v827
      %v832 = vsub.f32 1.0, %v828
      %v833 = vsub.f32 1.0, %v829
      %v834 = vsub.f32 1.0, %v830
      %v835 = vsub.f32 1.0, %v831
      %v836 = vmax.f32 %v832, 0.0
      %v837 = vmax.f32 %v833, 0.0
      %v838 = vmax.f32 %v834, 0.0
      %v839 = vmax.f32 %v835, 0.0
      %v840 = vlaneseq
      %v841 = vshrl.u32 %v840, 7
      %v842 = vsub.s32 5, %v841
      %v843 = vrot.slane %v494, %v842
      %v844 = vlaneseq
      %v845 = vshrl.u32 %v844, 7
      %v846 = vsub.s32 5, %v845
      %v847 = vrot.slane %v496, %v846
      %v848 = vsub.f32 %v843, %v553
      %v849 = vsub.f32 %v847, %v553
      %v850 = vsub.f32 %v843, %v558
      %v851 = vsub.f32 %v847, %v558
      %v852 = vand.u32 2147483647, %v848
      %v853 = vand.u32 2147483647, %v849
      %v854 = vand.u32 2147483647, %v850
      %v855 = vand.u32 2147483647, %v851
      %v856 = vsub.f32 1.0, %v852
      %v857 = vsub.f32 1.0, %v853
      %v858 = vsub.f32 1.0, %v854
      %v859 = vsub.f32 1.0, %v855
      %v860 = vmax.f32 %v856, 0.0
      %v861 = vmax.f32 %v857, 0.0
      %v862 = vmax.f32 %v858, 0.0
      %v863 = vmax.f32 %v859, 0.0
      %v864 = vlaneseq
      %v865 = vshrl.u32 %v864, 7
      %v866 = vsub.s32 6, %v865
      %v867 = vrot.slane %v494, %v866
      %v868 = vlaneseq
      %v869 = vshrl.u32 %v868, 7
      %v870 = vsub.s32 6, %v869
      %v871 = vrot.slane %v496, %v870
      %v872 = vsub.f32 %v867, %v519
      %v873 = vsub.f32 %v871, %v519
      %v874 = vsub.f32 %v867, %v524
      %v875 = vsub.f32 %v871, %v524
      %v876 = vand.u32 2147483647, %v872
      %v877 = vand.u32 2147483647, %v873
      %v878 = vand.u32 2147483647, %v874
      %v879 = vand.u32 2147483647, %v875
      %v880 = vsub.f32 1.0, %v876
      %v881 = vsub.f32 1.0, %v877
      %v882 = vsub.f32 1.0, %v878
      %v883 = vsub.f32 1.0, %v879
      %v884 = vmax.f32 %v880, 0.0
      %v885 = vmax.f32 %v881, 0.0
      %v886 = vmax.f32 %v882, 0.0
      %v887 = vmax.f32 %v883, 0.0
      %v888 = vlaneseq
      %v889 = vshrl.u32 %v888, 7
      %v890 = vsub.s32 7, %v889
      %v891 = vrot.slane %v494, %v890
      %v892 = vlaneseq
      %v893 = vshrl.u32 %v892, 7
      %v894 = vsub.s32 7, %v893
      %v895 = vrot.slane %v496, %v894
      %v896 = vsub.f32 %v891, %v553
      %v897 = vsub.f32 %v895, %v553
      %v898 = vsub.f32 %v891, %v558
      %v899 = vsub.f32 %v895, %v558
      %v900 = vand.u32 2147483647, %v896
      %v901 = vand.u32 2147483647, %v897
      %v902 = vand.u32 2147483647, %v898
      %v903 = vand.u32 2147483647, %v899
      %v904 = vsub.f32 1.0, %v900
      %v905 = vsub.f32 1.0, %v901
      %v906 = vsub.f32 1.0, %v902
      %v907 = vsub.f32 1.0, %v903
      %v908 = vmax.f32 %v904, 0.0
      %v909 = vmax.f32 %v905, 0.0
      %v910 = vmax.f32 %v906, 0.0
      %v911 = vmax.f32 %v907, 0.0
      %v912 = vlaneseq
      %v913 = vshrl.u32 %v912, 7
      %v914 = vsub.s32 0, %v913
      %v915 = vrot.slane %v500, %v914
      %v916 = vlaneseq
      %v917 = vshrl.u32 %v916, 7
      %v918 = vsub.s32 0, %v917
      %v919 = vrot.slane %v502, %v918
      %v920 = vsub.f32 %v915, %v519
      %v921 = vsub.f32 %v919, %v519
      %v922 = vsub.f32 %v915, %v524
      %v923 = vsub.f32 %v919, %v524
      %v924 = vand.u32 2147483647, %v920
      %v925 = vand.u32 2147483647, %v921
      %v926 = vand.u32 2147483647, %v922
      %v927 = vand.u32 2147483647, %v923
      %v928 = vsub.f32 1.0, %v924
      %v929 = vsub.f32 1.0, %v925
      %v930 = vsub.f32 1.0, %v926
      %v931 = vsub.f32 1.0, %v927
      %v932 = vmax.f32 %v928, 0.0
      %v933 = vmax.f32 %v929, 0.0
      %v934 = vmax.f32 %v930, 0.0
      %v935 = vmax.f32 %v931, 0.0
      %v936 = vlaneseq
      %v937 = vshrl.u32 %v936, 7
      %v938 = vsub.s32 1, %v937
      %v939 = vrot.slane %v500, %v938
      %v940 = vlaneseq
      %v941 = vshrl.u32 %v940, 7
      %v942 = vsub.s32 1, %v941
      %v943 = vrot.slane %v502, %v942
      %v944 = vsub.f32 %v939, %v553
      %v945 = vsub.f32 %v943, %v553
      %v946 = vsub.f32 %v939, %v558
      %v947 = vsub.f32 %v943, %v558
      %v948 = vand.u32 2147483647, %v944
      %v949 = vand.u32 2147483647, %v945
      %v950 = vand.u32 2147483647, %v946
      %v951 = vand.u32 2147483647, %v947
      %v952 = vsub.f32 1.0, %v948
      %v953 = vsub.f32 1.0, %v949
      %v954 = vsub.f32 1.0, %v950
      %v955 = vsub.f32 1.0, %v951
      %v956 = vmax.f32 %v952, 0.0
      %v957 = vmax.f32 %v953, 0.0
      %v958 = vmax.f32 %v954, 0.0
      %v959 = vmax.f32 %v955, 0.0
      %v960 = vld [vmem:[%s370] sm:$0xff]
      %v961 = vld [vmem:[%s370 + $0x8] sm:$0xff]
      %v962 = vld [vmem:[%s370 + $0x10] sm:$0xff]
      %v963 = vld [vmem:[%s370 + $0x18] sm:$0xff]
      %v964 = vld [vmem:[%s370 + $0x20] sm:$0xff]
      %v965 = vld [vmem:[%s370 + $0x28] sm:$0xff]
      %vm966 = vcmask 130048
      %v968 = vsel %vm966, %v960, 0
      %v971 = vsel %vm966, %v961, 0
      %v974 = vsel %vm966, %v962, 0
      %v977 = vsel %vm966, %v963, 0
      %v980 = vsel %vm966, %v964, 0
      %v983 = vsel %vm966, %v965, 0
      %985 = vmatprep.subr.mxu0 %v539
      %986 = vmatpush1.msra.mxu0 %v538
      %987 = vmatprep.subr.mxu0 %v541
      %988 = vmatpush1.msra.mxu0 %v540
      %989 = vmatprep.subr.mxu0 0.0
      %990 = vmatpush1.msra.mxu0 0.0
      %991 = vmatprep.subr.mxu0 0.0
      %992 = vmatpush1.msra.mxu0 0.0
      %993 = vmatprep.subr.mxu0 0.0
      %994 = vmatpush1.msra.mxu0 0.0
      %995 = vmatprep.subr.mxu0 0.0
      %996 = vmatpush1.msra.mxu0 0.0
      %997 = vmatprep.subr.mxu0 0.0
      %998 = vmatpush1.msra.mxu0 0.0
      %999 = vmatprep.subr.mxu0 0.0
      %1000 = vmatpush1.msra.mxu0 0.0
      %1001 = vmatprep.subr.mxu0 0.0
      %1002 = vmatpush1.msra.mxu0 0.0
      %1003 = vmatprep.subr.mxu0 0.0
      %1004 = vmatpush1.msra.mxu0 0.0
      %1005 = vmatprep.subr.mxu0 0.0
      %1006 = vmatpush1.msra.mxu0 0.0
      %1007 = vmatprep.subr.mxu0 0.0
      %1008 = vmatpush1.msra.mxu0 0.0
      %1009 = vmatprep.subr.mxu0 0.0
      %1010 = vmatpush1.msra.mxu0 0.0
      %1011 = vmatprep.subr.mxu0 0.0
      %1012 = vmatpush1.msra.mxu0 0.0
      %1013 = vmatprep.subr.mxu0 0.0
      %1014 = vmatpush1.msra.mxu0 0.0
      %1015 = vmatprep.subr.mxu0 0.0
      %1016 = vmatpush1.msra.mxu0 0.0
      %1017 = vmatprep.subr.mxu0 0.0
      %1018 = vmatpush1.msra.mxu0 0.0
      %1019 = vmatprep.subr.mxu0 0.0
      %1020 = vmatpush1.msra.mxu0 0.0
      %1021 = vmatprep.subr.mxu0 0.0
      %1022 = vmatpush1.msra.mxu0 0.0
      %1023 = vmatprep.subr.mxu0 0.0
      %1024 = vmatpush1.msra.mxu0 0.0
      %1025 = vmatprep.subr.mxu0 0.0
      %1026 = vmatpush1.msra.mxu0 0.0
      %1027 = vmatprep.subr.mxu0 0.0
      %1028 = vmatpush1.msra.mxu0 0.0
      %1029 = vmatprep.subr.mxu0 0.0
      %1030 = vmatpush1.msra.mxu0 0.0
      %1031 = vmatprep.subr.mxu0 0.0
      %1032 = vmatpush1.msra.mxu0 0.0
      %1033 = vmatprep.subr.mxu0 0.0
      %1034 = vmatpush1.msra.mxu0 0.0
      %1035 = vmatprep.subr.mxu0 0.0
      %1036 = vmatpush1.msra.mxu0 0.0
      %1037 = vmatprep.subr.mxu0 0.0
      %1038 = vmatpush1.msra.mxu0 0.0
      %1039 = vmatprep.subr.mxu0 0.0
      %1040 = vmatpush1.msra.mxu0 0.0
      %1041 = vmatprep.subr.mxu0 0.0
      %1042 = vmatpush1.msra.mxu0 0.0
      %1043 = vmatprep.subr.mxu0 0.0
      %1044 = vmatpush1.msra.mxu0 0.0
      %1045 = vmatprep.subr.mxu0 0.0
      %1046 = vmatpush1.msra.mxu0 0.0
      %1047 = vmatprep.subr.mxu0 0.0
      %1048 = vmatpush1.msra.mxu0 0.0
      %1049 = vmatprep.mubr.f32.mxu0 0.0
      %1050 = vmatmul.mubr.f32.gmra.mrb[0].mxu0 %v968
      %v1051 = vpop.f32.mrb[0].mxu0
      %v1052 = vadd.f32 0.0, %v1051
      %v1053 = vpop.f32.mrb[0].mxu0
      %v1054 = vadd.f32 0.0, %v1053
      %1055 = vmatprep.mubr.f32.mxu0 0.0
      %1056 = vmatmul.mubr.f32.gmra.mrb[0].mxu0 %v971
      %v1057 = vpop.f32.mrb[0].mxu0
      %v1058 = vadd.f32 0.0, %v1057
      %v1059 = vpop.f32.mrb[0].mxu0
      %v1060 = vadd.f32 0.0, %v1059
      %1061 = vmatprep.mubr.f32.mxu0 0.0
      %1062 = vmatmul.mubr.f32.gmra.mrb[0].mxu0 %v974
      %v1063 = vpop.f32.mrb[0].mxu0
      %v1064 = vadd.f32 0.0, %v1063
      %v1065 = vpop.f32.mrb[0].mxu0
      %v1066 = vadd.f32 0.0, %v1065
      %1067 = vmatprep.mubr.f32.mxu0 0.0
      %1068 = vmatmul.mubr.f32.gmra.mrb[0].mxu0 %v977
      %v1069 = vpop.f32.mrb[0].mxu0
      %v1070 = vadd.f32 0.0, %v1069
      %v1071 = vpop.f32.mrb[0].mxu0
      %v1072 = vadd.f32 0.0, %v1071
      %1073 = vmatprep.mubr.f32.mxu0 0.0
      %1074 = vmatmul.mubr.f32.gmra.mrb[0].mxu0 %v980
      %v1075 = vpop.f32.mrb[0].mxu0
      %v1076 = vadd.f32 0.0, %v1075
      %v1077 = vpop.f32.mrb[0].mxu0
      %v1078 = vadd.f32 0.0, %v1077
      %1079 = vmatprep.mubr.f32.mxu0 0.0
      %1080 = vmatmul.mubr.f32.gmra.mrb[0].mxu0 %v983
      %v1081 = vpop.f32.mrb[0].mxu0
      %v1082 = vadd.f32 0.0, %v1081
      %v1083 = vpop.f32.mrb[0].mxu0
      %v1084 = vadd.f32 0.0, %v1083
      %1085 = vdwg.mxu0
      %1086 = vmatprep.subr.mxu0 %v597
      %1087 = vmatpush1.msra.mxu0 %v596
      %1088 = vmatprep.subr.mxu0 %v599
      %1089 = vmatpush1.msra.mxu0 %v598
      %1090 = vmatprep.subr.mxu0 0.0
      %1091 = vmatpush1.msra.mxu0 0.0
      %1092 = vmatprep.subr.mxu0 0.0
      %1093 = vmatpush1.msra.mxu0 0.0
      %1094 = vmatprep.subr.mxu0 0.0
      %1095 = vmatpush1.msra.mxu0 0.0
      %1096 = vmatprep.subr.mxu0 0.0
      %1097 = vmatpush1.msra.mxu0 0.0
      %1098 = vmatprep.subr.mxu0 0.0
      %1099 = vmatpush1.msra.mxu0 0.0
      %1100 = vmatprep.subr.mxu0 0.0
      %1101 = vmatpush1.msra.mxu0 0.0
      %1102 = vmatprep.subr.mxu0 0.0
      %1103 = vmatpush1.msra.mxu0 0.0
      %1104 = vmatprep.subr.mxu0 0.0
      %1105 = vmatpush1.msra.mxu0 0.0
      %1106 = vmatprep.subr.mxu0 0.0
      %1107 = vmatpush1.msra.mxu0 0.0
      %1108 = vmatprep.subr.mxu0 0.0
      %1109 = vmatpush1.msra.mxu0 0.0
      %1110 = vmatprep.subr.mxu0 0.0
      %1111 = vmatpush1.msra.mxu0 0.0
      %1112 = vmatprep.subr.mxu0 0.0
      %1113 = vmatpush1.msra.mxu0 0.0
      %1114 = vmatprep.subr.mxu0 0.0
      %1115 = vmatpush1.msra.mxu0 0.0
      %1116 = vmatprep.subr.mxu0 0.0
      %1117 = vmatpush1.msra.mxu0 0.0
      %1118 = vmatprep.subr.mxu0 0.0
      %1119 = vmatpush1.msra.mxu0 0.0
      %1120 = vmatprep.subr.mxu0 0.0
      %1121 = vmatpush1.msra.mxu0 0.0
      %1122 = vmatprep.subr.mxu0 0.0
      %1123 = vmatpush1.msra.mxu0 0.0
      %1124 = vmatprep.subr.mxu0 0.0
      %1125 = vmatpush1.msra.mxu0 0.0
      %1126 = vmatprep.subr.mxu0 0.0
      %1127 = vmatpush1.msra.mxu0 0.0
      %1128 = vmatprep.subr.mxu0 0.0
      %1129 = vmatpush1.msra.mxu0 0.0
      %1130 = vmatprep.subr.mxu0 0.0
      %1131 = vmatpush1.msra.mxu0 0.0
      %1132 = vmatprep.subr.mxu0 0.0
      %1133 = vmatpush1.msra.mxu0 0.0
      %1134 = vmatprep.subr.mxu0 0.0
      %1135 = vmatpush1.msra.mxu0 0.0
      %1136 = vmatprep.subr.mxu0 0.0
      %1137 = vmatpush1.msra.mxu0 0.0
      %1138 = vmatprep.subr.mxu0 0.0
      %1139 = vmatpush1.msra.mxu0 0.0
      %1140 = vmatprep.subr.mxu0 0.0
      %1141 = vmatpush1.msra.mxu0 0.0
      %1142 = vmatprep.subr.mxu0 0.0
      %1143 = vmatpush1.msra.mxu0 0.0
      %1144 = vmatprep.subr.mxu0 0.0
      %1145 = vmatpush1.msra.mxu0 0.0
      %1146 = vmatprep.subr.mxu0 0.0
      %1147 = vmatpush1.msra.mxu0 0.0
      %1148 = vmatprep.subr.mxu0 0.0
      %1149 = vmatpush1.msra.mxu0 0.0
      %1150 = vmatprep.mubr.f32.mxu0 0.0
      %1151 = vmatmul.mubr.f32.gmra.mrb[0].mxu0 %v968
      %v1152 = vpop.f32.mrb[0].mxu0
      %v1153 = vadd.f32 0.0, %v1152
      %v1154 = vpop.f32.mrb[0].mxu0
      %v1155 = vadd.f32 0.0, %v1154
      %1156 = vmatprep.mubr.f32.mxu0 0.0
      %1157 = vmatmul.mubr.f32.gmra.mrb[0].mxu0 %v971
      %v1158 = vpop.f32.mrb[0].mxu0
      %v1159 = vadd.f32 0.0, %v1158
      %v1160 = vpop.f32.mrb[0].mxu0
      %v1161 = vadd.f32 0.0, %v1160
      %1162 = vmatprep.mubr.f32.mxu0 0.0
      %1163 = vmatmul.mubr.f32.gmra.mrb[0].mxu0 %v974
      %v1164 = vpop.f32.mrb[0].mxu0
      %v1165 = vadd.f32 0.0, %v1164
      %v1166 = vpop.f32.mrb[0].mxu0
      %v1167 = vadd.f32 0.0, %v1166
      %1168 = vmatprep.mubr.f32.mxu0 0.0
      %1169 = vmatmul.mubr.f32.gmra.mrb[0].mxu0 %v977
      %v1170 = vpop.f32.mrb[0].mxu0
      %v1171 = vadd.f32 0.0, %v1170
      %v1172 = vpop.f32.mrb[0].mxu0
      %v1173 = vadd.f32 0.0, %v1172
      %1174 = vmatprep.mubr.f32.mxu0 0.0
      %1175 = vmatmul.mubr.f32.gmra.mrb[0].mxu0 %v980
      %v1176 = vpop.f32.mrb[0].mxu0
      %v1177 = vadd.f32 0.0, %v1176
      %v1178 = vpop.f32.mrb[0].mxu0
      %v1179 = vadd.f32 0.0, %v1178
      %1180 = vmatprep.mubr.f32.mxu0 0.0
      %1181 = vmatmul.mubr.f32.gmra.mrb[0].mxu0 %v983
      %v1182 = vpop.f32.mrb[0].mxu0
      %v1183 = vadd.f32 0.0, %v1182
      %v1184 = vpop.f32.mrb[0].mxu0
      %v1185 = vadd.f32 0.0, %v1184
      %1186 = vdwg.mxu0
      %1187 = vmatprep.subr.mxu0 %v645
      %1188 = vmatpush1.msra.mxu0 %v644
      %1189 = vmatprep.subr.mxu0 %v647
      %1190 = vmatpush1.msra.mxu0 %v646
      %1191 = vmatprep.subr.mxu0 0.0
      %1192 = vmatpush1.msra.mxu0 0.0
      %1193 = vmatprep.subr.mxu0 0.0
      %1194 = vmatpush1.msra.mxu0 0.0
      %1195 = vmatprep.subr.mxu0 0.0
      %1196 = vmatpush1.msra.mxu0 0.0
      %1197 = vmatprep.subr.mxu0 0.0
      %1198 = vmatpush1.msra.mxu0 0.0
      %1199 = vmatprep.subr.mxu0 0.0
      %1200 = vmatpush1.msra.mxu0 0.0
      %1201 = vmatprep.subr.mxu0 0.0
      %1202 = vmatpush1.msra.mxu0 0.0
      %1203 = vmatprep.subr.mxu0 0.0
      %1204 = vmatpush1.msra.mxu0 0.0
      %1205 = vmatprep.subr.mxu0 0.0
      %1206 = vmatpush1.msra.mxu0 0.0
      %1207 = vmatprep.subr.mxu0 0.0
      %1208 = vmatpush1.msra.mxu0 0.0
      %1209 = vmatprep.subr.mxu0 0.0
      %1210 = vmatpush1.msra.mxu0 0.0
      %1211 = vmatprep.subr.mxu0 0.0
      %1212 = vmatpush1.msra.mxu0 0.0
      %1213 = vmatprep.subr.mxu0 0.0
      %1214 = vmatpush1.msra.mxu0 0.0
      %1215 = vmatprep.subr.mxu0 0.0
      %1216 = vmatpush1.msra.mxu0 0.0
      %1217 = vmatprep.subr.mxu0 0.0
      %1218 = vmatpush1.msra.mxu0 0.0
      %1219 = vmatprep.subr.mxu0 0.0
      %1220 = vmatpush1.msra.mxu0 0.0
      %1221 = vmatprep.subr.mxu0 0.0
      %1222 = vmatpush1.msra.mxu0 0.0
      %1223 = vmatprep.subr.mxu0 0.0
      %1224 = vmatpush1.msra.mxu0 0.0
      %1225 = vmatprep.subr.mxu0 0.0
      %1226 = vmatpush1.msra.mxu0 0.0
      %1227 = vmatprep.subr.mxu0 0.0
      %1228 = vmatpush1.msra.mxu0 0.0
      %1229 = vmatprep.subr.mxu0 0.0
      %1230 = vmatpush1.msra.mxu0 0.0
      %1231 = vmatprep.subr.mxu0 0.0
      %1232 = vmatpush1.msra.mxu0 0.0
      %1233 = vmatprep.subr.mxu0 0.0
      %1234 = vmatpush1.msra.mxu0 0.0
      %1235 = vmatprep.subr.mxu0 0.0
      %1236 = vmatpush1.msra.mxu0 0.0
      %1237 = vmatprep.subr.mxu0 0.0
      %1238 = vmatpush1.msra.mxu0 0.0
      %1239 = vmatprep.subr.mxu0 0.0
      %1240 = vmatpush1.msra.mxu0 0.0
      %1241 = vmatprep.subr.mxu0 0.0
      %1242 = vmatpush1.msra.mxu0 0.0
      %1243 = vmatprep.subr.mxu0 0.0
      %1244 = vmatpush1.msra.mxu0 0.0
      %1245 = vmatprep.subr.mxu0 0.0
      %1246 = vmatpush1.msra.mxu0 0.0
      %1247 = vmatprep.subr.mxu0 0.0
      %1248 = vmatpush1.msra.mxu0 0.0
      %1249 = vmatprep.subr.mxu0 0.0
      %1250 = vmatpush1.msra.mxu0 0.0
      %1251 = vmatprep.mubr.f32.mxu0 0.0
      %1252 = vmatmul.mubr.f32.gmra.mrb[0].mxu0 %v968
      %v1253 = vpop.f32.mrb[0].mxu0
      %v1254 = vadd.f32 0.0, %v1253
      %v1255 = vpop.f32.mrb[0].mxu0
      %v1256 = vadd.f32 0.0, %v1255
      %1257 = vmatprep.mubr.f32.mxu0 0.0
      %1258 = vmatmul.mubr.f32.gmra.mrb[0].mxu0 %v971
      %v1259 = vpop.f32.mrb[0].mxu0
      %v1260 = vadd.f32 0.0, %v1259
      %v1261 = vpop.f32.mrb[0].mxu0
      %v1262 = vadd.f32 0.0, %v1261
      %1263 = vmatprep.mubr.f32.mxu0 0.0
      %1264 = vmatmul.mubr.f32.gmra.mrb[0].mxu0 %v974
      %v1265 = vpop.f32.mrb[0].mxu0
      %v1266 = vadd.f32 0.0, %v1265
      %v1267 = vpop.f32.mrb[0].mxu0
      %v1268 = vadd.f32 0.0, %v1267
      %1269 = vmatprep.mubr.f32.mxu0 0.0
      %1270 = vmatmul.mubr.f32.gmra.mrb[0].mxu0 %v977
      %v1271 = vpop.f32.mrb[0].mxu0
      %v1272 = vadd.f32 0.0, %v1271
      %v1273 = vpop.f32.mrb[0].mxu0
      %v1274 = vadd.f32 0.0, %v1273
      %1275 = vmatprep.mubr.f32.mxu0 0.0
      %1276 = vmatmul.mubr.f32.gmra.mrb[0].mxu0 %v980
      %v1277 = vpop.f32.mrb[0].mxu0
      %v1278 = vadd.f32 0.0, %v1277
      %v1279 = vpop.f32.mrb[0].mxu0
      %v1280 = vadd.f32 0.0, %v1279
      %1281 = vmatprep.mubr.f32.mxu0 0.0
      %1282 = vmatmul.mubr.f32.gmra.mrb[0].mxu0 %v983
      %v1283 = vpop.f32.mrb[0].mxu0
      %v1284 = vadd.f32 0.0, %v1283
      %v1285 = vpop.f32.mrb[0].mxu0
      %v1286 = vadd.f32 0.0, %v1285
      %1287 = vdwg.mxu0
      %1288 = vmatprep.subr.mxu0 %v693
      %1289 = vmatpush1.msra.mxu0 %v692
      %1290 = vmatprep.subr.mxu0 %v695
      %1291 = vmatpush1.msra.mxu0 %v694
      %1292 = vmatprep.subr.mxu0 0.0
      %1293 = vmatpush1.msra.mxu0 0.0
      %1294 = vmatprep.subr.mxu0 0.0
      %1295 = vmatpush1.msra.mxu0 0.0
      %1296 = vmatprep.subr.mxu0 0.0
      %1297 = vmatpush1.msra.mxu0 0.0
      %1298 = vmatprep.subr.mxu0 0.0
      %1299 = vmatpush1.msra.mxu0 0.0
      %1300 = vmatprep.subr.mxu0 0.0
      %1301 = vmatpush1.msra.mxu0 0.0
      %1302 = vmatprep.subr.mxu0 0.0
      %1303 = vmatpush1.msra.mxu0 0.0
      %1304 = vmatprep.subr.mxu0 0.0
      %1305 = vmatpush1.msra.mxu0 0.0
      %1306 = vmatprep.subr.mxu0 0.0
      %1307 = vmatpush1.msra.mxu0 0.0
      %1308 = vmatprep.subr.mxu0 0.0
      %1309 = vmatpush1.msra.mxu0 0.0
      %1310 = vmatprep.subr.mxu0 0.0
      %1311 = vmatpush1.msra.mxu0 0.0
      %1312 = vmatprep.subr.mxu0 0.0
      %1313 = vmatpush1.msra.mxu0 0.0
      %1314 = vmatprep.subr.mxu0 0.0
      %1315 = vmatpush1.msra.mxu0 0.0
      %1316 = vmatprep.subr.mxu0 0.0
      %1317 = vmatpush1.msra.mxu0 0.0
      %1318 = vmatprep.subr.mxu0 0.0
      %1319 = vmatpush1.msra.mxu0 0.0
      %1320 = vmatprep.subr.mxu0 0.0
      %1321 = vmatpush1.msra.mxu0 0.0
      %1322 = vmatprep.subr.mxu0 0.0
      %1323 = vmatpush1.msra.mxu0 0.0
      %1324 = vmatprep.subr.mxu0 0.0
      %1325 = vmatpush1.msra.mxu0 0.0
      %1326 = vmatprep.subr.mxu0 0.0
      %1327 = vmatpush1.msra.mxu0 0.0
      %1328 = vmatprep.subr.mxu0 0.0
      %1329 = vmatpush1.msra.mxu0 0.0
      %1330 = vmatprep.subr.mxu0 0.0
      %1331 = vmatpush1.msra.mxu0 0.0
      %1332 = vmatprep.subr.mxu0 0.0
      %1333 = vmatpush1.msra.mxu0 0.0
      %1334 = vmatprep.subr.mxu0 0.0
      %1335 = vmatpush1.msra.mxu0 0.0
      %1336 = vmatprep.subr.mxu0 0.0
      %1337 = vmatpush1.msra.mxu0 0.0
      %1338 = vmatprep.subr.mxu0 0.0
      %1339 = vmatpush1.msra.mxu0 0.0
      %1340 = vmatprep.subr.mxu0 0.0
      %1341 = vmatpush1.msra.mxu0 0.0
      %1342 = vmatprep.subr.mxu0 0.0
      %1343 = vmatpush1.msra.mxu0 0.0
      %1344 = vmatprep.subr.mxu0 0.0
      %1345 = vmatpush1.msra.mxu0 0.0
      %1346 = vmatprep.subr.mxu0 0.0
      %1347 = vmatpush1.msra.mxu0 0.0
      %1348 = vmatprep.subr.mxu0 0.0
      %1349 = vmatpush1.msra.mxu0 0.0
      %1350 = vmatprep.subr.mxu0 0.0
      %1351 = vmatpush1.msra.mxu0 0.0
      %1352 = vmatprep.mubr.f32.mxu0 0.0
      %1353 = vmatmul.mubr.f32.gmra.mrb[0].mxu0 %v968
      %v1354 = vpop.f32.mrb[0].mxu0
      %v1355 = vadd.f32 0.0, %v1354
      %v1356 = vpop.f32.mrb[0].mxu0
      %v1357 = vadd.f32 0.0, %v1356
      %1358 = vmatprep.mubr.f32.mxu0 0.0
      %1359 = vmatmul.mubr.f32.gmra.mrb[0].mxu0 %v971
      %v1360 = vpop.f32.mrb[0].mxu0
      %v1361 = vadd.f32 0.0, %v1360
      %v1362 = vpop.f32.mrb[0].mxu0
      %v1363 = vadd.f32 0.0, %v1362
      %1364 = vmatprep.mubr.f32.mxu0 0.0
      %1365 = vmatmul.mubr.f32.gmra.mrb[0].mxu0 %v974
      %v1366 = vpop.f32.mrb[0].mxu0
      %v1367 = vadd.f32 0.0, %v1366
      %v1368 = vpop.f32.mrb[0].mxu0
      %v1369 = vadd.f32 0.0, %v1368
      %1370 = vmatprep.mubr.f32.mxu0 0.0
      %1371 = vmatmul.mubr.f32.gmra.mrb[0].mxu0 %v977
      %v1372 = vpop.f32.mrb[0].mxu0
      %v1373 = vadd.f32 0.0, %v1372
      %v1374 = vpop.f32.mrb[0].mxu0
      %v1375 = vadd.f32 0.0, %v1374
      %1376 = vmatprep.mubr.f32.mxu0 0.0
      %1377 = vmatmul.mubr.f32.gmra.mrb[0].mxu0 %v980
      %v1378 = vpop.f32.mrb[0].mxu0
      %v1379 = vadd.f32 0.0, %v1378
      %v1380 = vpop.f32.mrb[0].mxu0
      %v1381 = vadd.f32 0.0, %v1380
      %1382 = vmatprep.mubr.f32.mxu0 0.0
      %1383 = vmatmul.mubr.f32.gmra.mrb[0].mxu0 %v983
      %v1384 = vpop.f32.mrb[0].mxu0
      %v1385 = vadd.f32 0.0, %v1384
      %v1386 = vpop.f32.mrb[0].mxu0
      %v1387 = vadd.f32 0.0, %v1386
      %1388 = vdwg.mxu0
      %1389 = vmatprep.subr.mxu0 %v741
      %1390 = vmatpush1.msra.mxu0 %v740
      %1391 = vmatprep.subr.mxu0 %v743
      %1392 = vmatpush1.msra.mxu0 %v742
      %1393 = vmatprep.subr.mxu0 0.0
      %1394 = vmatpush1.msra.mxu0 0.0
      %1395 = vmatprep.subr.mxu0 0.0
      %1396 = vmatpush1.msra.mxu0 0.0
      %1397 = vmatprep.subr.mxu0 0.0
      %1398 = vmatpush1.msra.mxu0 0.0
      %1399 = vmatprep.subr.mxu0 0.0
      %1400 = vmatpush1.msra.mxu0 0.0
      %1401 = vmatprep.subr.mxu0 0.0
      %1402 = vmatpush1.msra.mxu0 0.0
      %1403 = vmatprep.subr.mxu0 0.0
      %1404 = vmatpush1.msra.mxu0 0.0
      %1405 = vmatprep.subr.mxu0 0.0
      %1406 = vmatpush1.msra.mxu0 0.0
      %1407 = vmatprep.subr.mxu0 0.0
      %1408 = vmatpush1.msra.mxu0 0.0
      %1409 = vmatprep.subr.mxu0 0.0
      %1410 = vmatpush1.msra.mxu0 0.0
      %1411 = vmatprep.subr.mxu0 0.0
      %1412 = vmatpush1.msra.mxu0 0.0
      %1413 = vmatprep.subr.mxu0 0.0
      %1414 = vmatpush1.msra.mxu0 0.0
      %1415 = vmatprep.subr.mxu0 0.0
      %1416 = vmatpush1.msra.mxu0 0.0
      %1417 = vmatprep.subr.mxu0 0.0
      %1418 = vmatpush1.msra.mxu0 0.0
      %1419 = vmatprep.subr.mxu0 0.0
      %1420 = vmatpush1.msra.mxu0 0.0
      %1421 = vmatprep.subr.mxu0 0.0
      %1422 = vmatpush1.msra.mxu0 0.0
      %1423 = vmatprep.subr.mxu0 0.0
      %1424 = vmatpush1.msra.mxu0 0.0
      %1425 = vmatprep.subr.mxu0 0.0
      %1426 = vmatpush1.msra.mxu0 0.0
      %1427 = vmatprep.subr.mxu0 0.0
      %1428 = vmatpush1.msra.mxu0 0.0
      %1429 = vmatprep.subr.mxu0 0.0
      %1430 = vmatpush1.msra.mxu0 0.0
      %1431 = vmatprep.subr.mxu0 0.0
      %1432 = vmatpush1.msra.mxu0 0.0
      %1433 = vmatprep.subr.mxu0 0.0
      %1434 = vmatpush1.msra.mxu0 0.0
      %1435 = vmatprep.subr.mxu0 0.0
      %1436 = vmatpush1.msra.mxu0 0.0
      %1437 = vmatprep.subr.mxu0 0.0
      %1438 = vmatpush1.msra.mxu0 0.0
      %1439 = vmatprep.subr.mxu0 0.0
      %1440 = vmatpush1.msra.mxu0 0.0
      %1441 = vmatprep.subr.mxu0 0.0
      %1442 = vmatpush1.msra.mxu0 0.0
      %1443 = vmatprep.subr.mxu0 0.0
      %1444 = vmatpush1.msra.mxu0 0.0
      %1445 = vmatprep.subr.mxu0 0.0
      %1446 = vmatpush1.msra.mxu0 0.0
      %1447 = vmatprep.subr.mxu0 0.0
      %1448 = vmatpush1.msra.mxu0 0.0
      %1449 = vmatprep.subr.mxu0 0.0
      %1450 = vmatpush1.msra.mxu0 0.0
      %1451 = vmatprep.subr.mxu0 0.0
      %1452 = vmatpush1.msra.mxu0 0.0
      %1453 = vmatprep.mubr.f32.mxu0 0.0
      %1454 = vmatmul.mubr.f32.gmra.mrb[0].mxu0 %v968
      %v1455 = vpop.f32.mrb[0].mxu0
      %v1456 = vadd.f32 0.0, %v1455
      %v1457 = vpop.f32.mrb[0].mxu0
      %v1458 = vadd.f32 0.0, %v1457
      %1459 = vmatprep.mubr.f32.mxu0 0.0
      %1460 = vmatmul.mubr.f32.gmra.mrb[0].mxu0 %v971
      %v1461 = vpop.f32.mrb[0].mxu0
      %v1462 = vadd.f32 0.0, %v1461
      %v1463 = vpop.f32.mrb[0].mxu0
      %v1464 = vadd.f32 0.0, %v1463
      %1465 = vmatprep.mubr.f32.mxu0 0.0
      %1466 = vmatmul.mubr.f32.gmra.mrb[0].mxu0 %v974
      %v1467 = vpop.f32.mrb[0].mxu0
      %v1468 = vadd.f32 0.0, %v1467
      %v1469 = vpop.f32.mrb[0].mxu0
      %v1470 = vadd.f32 0.0, %v1469
      %1471 = vmatprep.mubr.f32.mxu0 0.0
      %1472 = vmatmul.mubr.f32.gmra.mrb[0].mxu0 %v977
      %v1473 = vpop.f32.mrb[0].mxu0
      %v1474 = vadd.f32 0.0, %v1473
      %v1475 = vpop.f32.mrb[0].mxu0
      %v1476 = vadd.f32 0.0, %v1475
      %1477 = vmatprep.mubr.f32.mxu0 0.0
      %1478 = vmatmul.mubr.f32.gmra.mrb[0].mxu0 %v980
      %v1479 = vpop.f32.mrb[0].mxu0
      %v1480 = vadd.f32 0.0, %v1479
      %v1481 = vpop.f32.mrb[0].mxu0
      %v1482 = vadd.f32 0.0, %v1481
      %1483 = vmatprep.mubr.f32.mxu0 0.0
      %1484 = vmatmul.mubr.f32.gmra.mrb[0].mxu0 %v983
      %v1485 = vpop.f32.mrb[0].mxu0
      %v1486 = vadd.f32 0.0, %v1485
      %v1487 = vpop.f32.mrb[0].mxu0
      %v1488 = vadd.f32 0.0, %v1487
      %1489 = vdwg.mxu0
      %1490 = vmatprep.subr.mxu0 %v789
      %1491 = vmatpush1.msra.mxu0 %v788
      %1492 = vmatprep.subr.mxu0 %v791
      %1493 = vmatpush1.msra.mxu0 %v790
      %1494 = vmatprep.subr.mxu0 0.0
      %1495 = vmatpush1.msra.mxu0 0.0
      %1496 = vmatprep.subr.mxu0 0.0
      %1497 = vmatpush1.msra.mxu0 0.0
      %1498 = vmatprep.subr.mxu0 0.0
      %1499 = vmatpush1.msra.mxu0 0.0
      %1500 = vmatprep.subr.mxu0 0.0
      %1501 = vmatpush1.msra.mxu0 0.0
      %1502 = vmatprep.subr.mxu0 0.0
      %1503 = vmatpush1.msra.mxu0 0.0
      %1504 = vmatprep.subr.mxu0 0.0
      %1505 = vmatpush1.msra.mxu0 0.0
      %1506 = vmatprep.subr.mxu0 0.0
      %1507 = vmatpush1.msra.mxu0 0.0
      %1508 = vmatprep.subr.mxu0 0.0
      %1509 = vmatpush1.msra.mxu0 0.0
      %1510 = vmatprep.subr.mxu0 0.0
      %1511 = vmatpush1.msra.mxu0 0.0
      %1512 = vmatprep.subr.mxu0 0.0
      %1513 = vmatpush1.msra.mxu0 0.0
      %1514 = vmatprep.subr.mxu0 0.0
      %1515 = vmatpush1.msra.mxu0 0.0
      %1516 = vmatprep.subr.mxu0 0.0
      %1517 = vmatpush1.msra.mxu0 0.0
      %1518 = vmatprep.subr.mxu0 0.0
      %1519 = vmatpush1.msra.mxu0 0.0
      %1520 = vmatprep.subr.mxu0 0.0
      %1521 = vmatpush1.msra.mxu0 0.0
      %1522 = vmatprep.subr.mxu0 0.0
      %1523 = vmatpush1.msra.mxu0 0.0
      %1524 = vmatprep.subr.mxu0 0.0
      %1525 = vmatpush1.msra.mxu0 0.0
      %1526 = vmatprep.subr.mxu0 0.0
      %1527 = vmatpush1.msra.mxu0 0.0
      %1528 = vmatprep.subr.mxu0 0.0
      %1529 = vmatpush1.msra.mxu0 0.0
      %1530 = vmatprep.subr.mxu0 0.0
      %1531 = vmatpush1.msra.mxu0 0.0
      %1532 = vmatprep.subr.mxu0 0.0
      %1533 = vmatpush1.msra.mxu0 0.0
      %1534 = vmatprep.subr.mxu0 0.0
      %1535 = vmatpush1.msra.mxu0 0.0
      %1536 = vmatprep.subr.mxu0 0.0
      %1537 = vmatpush1.msra.mxu0 0.0
      %1538 = vmatprep.subr.mxu0 0.0
      %1539 = vmatpush1.msra.mxu0 0.0
      %1540 = vmatprep.subr.mxu0 0.0
      %1541 = vmatpush1.msra.mxu0 0.0
      %1542 = vmatprep.subr.mxu0 0.0
      %1543 = vmatpush1.msra.mxu0 0.0
      %1544 = vmatprep.subr.mxu0 0.0
      %1545 = vmatpush1.msra.mxu0 0.0
      %1546 = vmatprep.subr.mxu0 0.0
      %1547 = vmatpush1.msra.mxu0 0.0
      %1548 = vmatprep.subr.mxu0 0.0
      %1549 = vmatpush1.msra.mxu0 0.0
      %1550 = vmatprep.subr.mxu0 0.0
      %1551 = vmatpush1.msra.mxu0 0.0
      %1552 = vmatprep.subr.mxu0 0.0
      %1553 = vmatpush1.msra.mxu0 0.0
      %1554 = vmatprep.mubr.f32.mxu0 0.0
      %1555 = vmatmul.mubr.f32.gmra.mrb[0].mxu0 %v968
      %v1556 = vpop.f32.mrb[0].mxu0
      %v1557 = vadd.f32 0.0, %v1556
      %v1558 = vpop.f32.mrb[0].mxu0
      %v1559 = vadd.f32 0.0, %v1558
      %1560 = vmatprep.mubr.f32.mxu0 0.0
      %1561 = vmatmul.mubr.f32.gmra.mrb[0].mxu0 %v971
      %v1562 = vpop.f32.mrb[0].mxu0
      %v1563 = vadd.f32 0.0, %v1562
      %v1564 = vpop.f32.mrb[0].mxu0
      %v1565 = vadd.f32 0.0, %v1564
      %1566 = vmatprep.mubr.f32.mxu0 0.0
      %1567 = vmatmul.mubr.f32.gmra.mrb[0].mxu0 %v974
      %v1568 = vpop.f32.mrb[0].mxu0
      %v1569 = vadd.f32 0.0, %v1568
      %v1570 = vpop.f32.mrb[0].mxu0
      %v1571 = vadd.f32 0.0, %v1570
      %1572 = vmatprep.mubr.f32.mxu0 0.0
      %1573 = vmatmul.mubr.f32.gmra.mrb[0].mxu0 %v977
      %v1574 = vpop.f32.mrb[0].mxu0
      %v1575 = vadd.f32 0.0, %v1574
      %v1576 = vpop.f32.mrb[0].mxu0
      %v1577 = vadd.f32 0.0, %v1576
      %1578 = vmatprep.mubr.f32.mxu0 0.0
      %1579 = vmatmul.mubr.f32.gmra.mrb[0].mxu0 %v980
      %v1580 = vpop.f32.mrb[0].mxu0
      %v1581 = vadd.f32 0.0, %v1580
      %v1582 = vpop.f32.mrb[0].mxu0
      %v1583 = vadd.f32 0.0, %v1582
      %1584 = vmatprep.mubr.f32.mxu0 0.0
      %1585 = vmatmul.mubr.f32.gmra.mrb[0].mxu0 %v983
      %v1586 = vpop.f32.mrb[0].mxu0
      %v1587 = vadd.f32 0.0, %v1586
      %v1588 = vpop.f32.mrb[0].mxu0
      %v1589 = vadd.f32 0.0, %v1588
      %1590 = vdwg.mxu0
      %1591 = vmatprep.subr.mxu0 %v837
      %1592 = vmatpush1.msra.mxu0 %v836
      %1593 = vmatprep.subr.mxu0 %v839
      %1594 = vmatpush1.msra.mxu0 %v838
      %1595 = vmatprep.subr.mxu0 0.0
      %1596 = vmatpush1.msra.mxu0 0.0
      %1597 = vmatprep.subr.mxu0 0.0
      %1598 = vmatpush1.msra.mxu0 0.0
      %1599 = vmatprep.subr.mxu0 0.0
      %1600 = vmatpush1.msra.mxu0 0.0
      %1601 = vmatprep.subr.mxu0 0.0
      %1602 = vmatpush1.msra.mxu0 0.0
      %1603 = vmatprep.subr.mxu0 0.0
      %1604 = vmatpush1.msra.mxu0 0.0
      %1605 = vmatprep.subr.mxu0 0.0
      %1606 = vmatpush1.msra.mxu0 0.0
      %1607 = vmatprep.subr.mxu0 0.0
      %1608 = vmatpush1.msra.mxu0 0.0
      %1609 = vmatprep.subr.mxu0 0.0
      %1610 = vmatpush1.msra.mxu0 0.0
      %1611 = vmatprep.subr.mxu0 0.0
      %1612 = vmatpush1.msra.mxu0 0.0
      %1613 = vmatprep.subr.mxu0 0.0
      %1614 = vmatpush1.msra.mxu0 0.0
      %1615 = vmatprep.subr.mxu0 0.0
      %1616 = vmatpush1.msra.mxu0 0.0
      %1617 = vmatprep.subr.mxu0 0.0
      %1618 = vmatpush1.msra.mxu0 0.0
      %1619 = vmatprep.subr.mxu0 0.0
      %1620 = vmatpush1.msra.mxu0 0.0
      %1621 = vmatprep.subr.mxu0 0.0
      %1622 = vmatpush1.msra.mxu0 0.0
      %1623 = vmatprep.subr.mxu0 0.0
      %1624 = vmatpush1.msra.mxu0 0.0
      %1625 = vmatprep.subr.mxu0 0.0
      %1626 = vmatpush1.msra.mxu0 0.0
      %1627 = vmatprep.subr.mxu0 0.0
      %1628 = vmatpush1.msra.mxu0 0.0
      %1629 = vmatprep.subr.mxu0 0.0
      %1630 = vmatpush1.msra.mxu0 0.0
      %1631 = vmatprep.subr.mxu0 0.0
      %1632 = vmatpush1.msra.mxu0 0.0
      %1633 = vmatprep.subr.mxu0 0.0
      %1634 = vmatpush1.msra.mxu0 0.0
      %1635 = vmatprep.subr.mxu0 0.0
      %1636 = vmatpush1.msra.mxu0 0.0
      %1637 = vmatprep.subr.mxu0 0.0
      %1638 = vmatpush1.msra.mxu0 0.0
      %1639 = vmatprep.subr.mxu0 0.0
      %1640 = vmatpush1.msra.mxu0 0.0
      %1641 = vmatprep.subr.mxu0 0.0
      %1642 = vmatpush1.msra.mxu0 0.0
      %1643 = vmatprep.subr.mxu0 0.0
      %1644 = vmatpush1.msra.mxu0 0.0
      %1645 = vmatprep.subr.mxu0 0.0
      %1646 = vmatpush1.msra.mxu0 0.0
      %1647 = vmatprep.subr.mxu0 0.0
      %1648 = vmatpush1.msra.mxu0 0.0
      %1649 = vmatprep.subr.mxu0 0.0
      %1650 = vmatpush1.msra.mxu0 0.0
      %1651 = vmatprep.subr.mxu0 0.0
      %1652 = vmatpush1.msra.mxu0 0.0
      %1653 = vmatprep.subr.mxu0 0.0
      %1654 = vmatpush1.msra.mxu0 0.0
      %1655 = vmatprep.mubr.f32.mxu0 0.0
      %1656 = vmatmul.mubr.f32.gmra.mrb[0].mxu0 %v968
      %v1657 = vpop.f32.mrb[0].mxu0
      %v1658 = vadd.f32 0.0, %v1657
      %v1659 = vpop.f32.mrb[0].mxu0
      %v1660 = vadd.f32 0.0, %v1659
      %1661 = vmatprep.mubr.f32.mxu0 0.0
      %1662 = vmatmul.mubr.f32.gmra.mrb[0].mxu0 %v971
      %v1663 = vpop.f32.mrb[0].mxu0
      %v1664 = vadd.f32 0.0, %v1663
      %v1665 = vpop.f32.mrb[0].mxu0
      %v1666 = vadd.f32 0.0, %v1665
      %1667 = vmatprep.mubr.f32.mxu0 0.0
      %1668 = vmatmul.mubr.f32.gmra.mrb[0].mxu0 %v974
      %v1669 = vpop.f32.mrb[0].mxu0
      %v1670 = vadd.f32 0.0, %v1669
      %v1671 = vpop.f32.mrb[0].mxu0
      %v1672 = vadd.f32 0.0, %v1671
      %1673 = vmatprep.mubr.f32.mxu0 0.0
      %1674 = vmatmul.mubr.f32.gmra.mrb[0].mxu0 %v977
      %v1675 = vpop.f32.mrb[0].mxu0
      %v1676 = vadd.f32 0.0, %v1675
      %v1677 = vpop.f32.mrb[0].mxu0
      %v1678 = vadd.f32 0.0, %v1677
      %1679 = vmatprep.mubr.f32.mxu0 0.0
      %1680 = vmatmul.mubr.f32.gmra.mrb[0].mxu0 %v980
      %v1681 = vpop.f32.mrb[0].mxu0
      %v1682 = vadd.f32 0.0, %v1681
      %v1683 = vpop.f32.mrb[0].mxu0
      %v1684 = vadd.f32 0.0, %v1683
      %1685 = vmatprep.mubr.f32.mxu0 0.0
      %1686 = vmatmul.mubr.f32.gmra.mrb[0].mxu0 %v983
      %v1687 = vpop.f32.mrb[0].mxu0
      %v1688 = vadd.f32 0.0, %v1687
      %v1689 = vpop.f32.mrb[0].mxu0
      %v1690 = vadd.f32 0.0, %v1689
      %1691 = vdwg.mxu0
      %1692 = vmatprep.subr.mxu0 %v885
      %1693 = vmatpush1.msra.mxu0 %v884
      %1694 = vmatprep.subr.mxu0 %v887
      %1695 = vmatpush1.msra.mxu0 %v886
      %1696 = vmatprep.subr.mxu0 0.0
      %1697 = vmatpush1.msra.mxu0 0.0
      %1698 = vmatprep.subr.mxu0 0.0
      %1699 = vmatpush1.msra.mxu0 0.0
      %1700 = vmatprep.subr.mxu0 0.0
      %1701 = vmatpush1.msra.mxu0 0.0
      %1702 = vmatprep.subr.mxu0 0.0
      %1703 = vmatpush1.msra.mxu0 0.0
      %1704 = vmatprep.subr.mxu0 0.0
      %1705 = vmatpush1.msra.mxu0 0.0
      %1706 = vmatprep.subr.mxu0 0.0
      %1707 = vmatpush1.msra.mxu0 0.0
      %1708 = vmatprep.subr.mxu0 0.0
      %1709 = vmatpush1.msra.mxu0 0.0
      %1710 = vmatprep.subr.mxu0 0.0
      %1711 = vmatpush1.msra.mxu0 0.0
      %1712 = vmatprep.subr.mxu0 0.0
      %1713 = vmatpush1.msra.mxu0 0.0
      %1714 = vmatprep.subr.mxu0 0.0
      %1715 = vmatpush1.msra.mxu0 0.0
      %1716 = vmatprep.subr.mxu0 0.0
      %1717 = vmatpush1.msra.mxu0 0.0
      %1718 = vmatprep.subr.mxu0 0.0
      %1719 = vmatpush1.msra.mxu0 0.0
      %1720 = vmatprep.subr.mxu0 0.0
      %1721 = vmatpush1.msra.mxu0 0.0
      %1722 = vmatprep.subr.mxu0 0.0
      %1723 = vmatpush1.msra.mxu0 0.0
      %1724 = vmatprep.subr.mxu0 0.0
      %1725 = vmatpush1.msra.mxu0 0.0
      %1726 = vmatprep.subr.mxu0 0.0
      %1727 = vmatpush1.msra.mxu0 0.0
      %1728 = vmatprep.subr.mxu0 0.0
      %1729 = vmatpush1.msra.mxu0 0.0
      %1730 = vmatprep.subr.mxu0 0.0
      %1731 = vmatpush1.msra.mxu0 0.0
      %1732 = vmatprep.subr.mxu0 0.0
      %1733 = vmatpush1.msra.mxu0 0.0
      %1734 = vmatprep.subr.mxu0 0.0
      %1735 = vmatpush1.msra.mxu0 0.0
      %1736 = vmatprep.subr.mxu0 0.0
      %1737 = vmatpush1.msra.mxu0 0.0
      %1738 = vmatprep.subr.mxu0 0.0
      %1739 = vmatpush1.msra.mxu0 0.0
      %1740 = vmatprep.subr.mxu0 0.0
      %1741 = vmatpush1.msra.mxu0 0.0
      %1742 = vmatprep.subr.mxu0 0.0
      %1743 = vmatpush1.msra.mxu0 0.0
      %1744 = vmatprep.subr.mxu0 0.0
      %1745 = vmatpush1.msra.mxu0 0.0
      %1746 = vmatprep.subr.mxu0 0.0
      %1747 = vmatpush1.msra.mxu0 0.0
      %1748 = vmatprep.subr.mxu0 0.0
      %1749 = vmatpush1.msra.mxu0 0.0
      %1750 = vmatprep.subr.mxu0 0.0
      %1751 = vmatpush1.msra.mxu0 0.0
      %1752 = vmatprep.subr.mxu0 0.0
      %1753 = vmatpush1.msra.mxu0 0.0
      %1754 = vmatprep.subr.mxu0 0.0
      %1755 = vmatpush1.msra.mxu0 0.0
      %1756 = vmatprep.mubr.f32.mxu0 0.0
      %1757 = vmatmul.mubr.f32.gmra.mrb[0].mxu0 %v968
      %v1758 = vpop.f32.mrb[0].mxu0
      %v1759 = vadd.f32 0.0, %v1758
      %v1760 = vpop.f32.mrb[0].mxu0
      %v1761 = vadd.f32 0.0, %v1760
      %1762 = vmatprep.mubr.f32.mxu0 0.0
      %1763 = vmatmul.mubr.f32.gmra.mrb[0].mxu0 %v971
      %v1764 = vpop.f32.mrb[0].mxu0
      %v1765 = vadd.f32 0.0, %v1764
      %v1766 = vpop.f32.mrb[0].mxu0
      %v1767 = vadd.f32 0.0, %v1766
      %1768 = vmatprep.mubr.f32.mxu0 0.0
      %1769 = vmatmul.mubr.f32.gmra.mrb[0].mxu0 %v974
      %v1770 = vpop.f32.mrb[0].mxu0
      %v1771 = vadd.f32 0.0, %v1770
      %v1772 = vpop.f32.mrb[0].mxu0
      %v1773 = vadd.f32 0.0, %v1772
      %1774 = vmatprep.mubr.f32.mxu0 0.0
      %1775 = vmatmul.mubr.f32.gmra.mrb[0].mxu0 %v977
      %v1776 = vpop.f32.mrb[0].mxu0
      %v1777 = vadd.f32 0.0, %v1776
      %v1778 = vpop.f32.mrb[0].mxu0
      %v1779 = vadd.f32 0.0, %v1778
      %1780 = vmatprep.mubr.f32.mxu0 0.0
      %1781 = vmatmul.mubr.f32.gmra.mrb[0].mxu0 %v980
      %v1782 = vpop.f32.mrb[0].mxu0
      %v1783 = vadd.f32 0.0, %v1782
      %v1784 = vpop.f32.mrb[0].mxu0
      %v1785 = vadd.f32 0.0, %v1784
      %1786 = vmatprep.mubr.f32.mxu0 0.0
      %1787 = vmatmul.mubr.f32.gmra.mrb[0].mxu0 %v983
      %v1788 = vpop.f32.mrb[0].mxu0
      %v1789 = vadd.f32 0.0, %v1788
      %v1790 = vpop.f32.mrb[0].mxu0
      %v1791 = vadd.f32 0.0, %v1790
      %1792 = vdwg.mxu0
      %1793 = vmatprep.subr.mxu0 %v933
      %1794 = vmatpush1.msra.mxu0 %v932
      %1795 = vmatprep.subr.mxu0 %v935
      %1796 = vmatpush1.msra.mxu0 %v934
      %1797 = vmatprep.subr.mxu0 0.0
      %1798 = vmatpush1.msra.mxu0 0.0
      %1799 = vmatprep.subr.mxu0 0.0
      %1800 = vmatpush1.msra.mxu0 0.0
      %1801 = vmatprep.subr.mxu0 0.0
      %1802 = vmatpush1.msra.mxu0 0.0
      %1803 = vmatprep.subr.mxu0 0.0
      %1804 = vmatpush1.msra.mxu0 0.0
      %1805 = vmatprep.subr.mxu0 0.0
      %1806 = vmatpush1.msra.mxu0 0.0
      %1807 = vmatprep.subr.mxu0 0.0
      %1808 = vmatpush1.msra.mxu0 0.0
      %1809 = vmatprep.subr.mxu0 0.0
      %1810 = vmatpush1.msra.mxu0 0.0
      %1811 = vmatprep.subr.mxu0 0.0
      %1812 = vmatpush1.msra.mxu0 0.0
      %1813 = vmatprep.subr.mxu0 0.0
      %1814 = vmatpush1.msra.mxu0 0.0
      %1815 = vmatprep.subr.mxu0 0.0
      %1816 = vmatpush1.msra.mxu0 0.0
      %1817 = vmatprep.subr.mxu0 0.0
      %1818 = vmatpush1.msra.mxu0 0.0
      %1819 = vmatprep.subr.mxu0 0.0
      %1820 = vmatpush1.msra.mxu0 0.0
      %1821 = vmatprep.subr.mxu0 0.0
      %1822 = vmatpush1.msra.mxu0 0.0
      %1823 = vmatprep.subr.mxu0 0.0
      %1824 = vmatpush1.msra.mxu0 0.0
      %1825 = vmatprep.subr.mxu0 0.0
      %1826 = vmatpush1.msra.mxu0 0.0
      %1827 = vmatprep.subr.mxu0 0.0
      %1828 = vmatpush1.msra.mxu0 0.0
      %1829 = vmatprep.subr.mxu0 0.0
      %1830 = vmatpush1.msra.mxu0 0.0
      %1831 = vmatprep.subr.mxu0 0.0
      %1832 = vmatpush1.msra.mxu0 0.0
      %1833 = vmatprep.subr.mxu0 0.0
      %1834 = vmatpush1.msra.mxu0 0.0
      %1835 = vmatprep.subr.mxu0 0.0
      %1836 = vmatpush1.msra.mxu0 0.0
      %1837 = vmatprep.subr.mxu0 0.0
      %1838 = vmatpush1.msra.mxu0 0.0
      %1839 = vmatprep.subr.mxu0 0.0
      %1840 = vmatpush1.msra.mxu0 0.0
      %1841 = vmatprep.subr.mxu0 0.0
      %1842 = vmatpush1.msra.mxu0 0.0
      %1843 = vmatprep.subr.mxu0 0.0
      %1844 = vmatpush1.msra.mxu0 0.0
      %1845 = vmatprep.subr.mxu0 0.0
      %1846 = vmatpush1.msra.mxu0 0.0
      %1847 = vmatprep.subr.mxu0 0.0
      %1848 = vmatpush1.msra.mxu0 0.0
      %1849 = vmatprep.subr.mxu0 0.0
      %1850 = vmatpush1.msra.mxu0 0.0
      %1851 = vmatprep.subr.mxu0 0.0
      %1852 = vmatpush1.msra.mxu0 0.0
      %1853 = vmatprep.subr.mxu0 0.0
      %1854 = vmatpush1.msra.mxu0 0.0
      %1855 = vmatprep.subr.mxu0 0.0
      %1856 = vmatpush1.msra.mxu0 0.0
      %1857 = vmatprep.mubr.f32.mxu0 0.0
      %1858 = vmatmul.mubr.f32.gmra.mrb[0].mxu0 %v968
      %v1859 = vpop.f32.mrb[0].mxu0
      %v1860 = vadd.f32 0.0, %v1859
      %v1861 = vpop.f32.mrb[0].mxu0
      %v1862 = vadd.f32 0.0, %v1861
      %1863 = vmatprep.mubr.f32.mxu0 0.0
      %1864 = vmatmul.mubr.f32.gmra.mrb[0].mxu0 %v971
      %v1865 = vpop.f32.mrb[0].mxu0
      %v1866 = vadd.f32 0.0, %v1865
      %v1867 = vpop.f32.mrb[0].mxu0
      %v1868 = vadd.f32 0.0, %v1867
      %1869 = vmatprep.mubr.f32.mxu0 0.0
      %1870 = vmatmul.mubr.f32.gmra.mrb[0].mxu0 %v974
      %v1871 = vpop.f32.mrb[0].mxu0
      %v1872 = vadd.f32 0.0, %v1871
      %v1873 = vpop.f32.mrb[0].mxu0
      %v1874 = vadd.f32 0.0, %v1873
      %1875 = vmatprep.mubr.f32.mxu0 0.0
      %1876 = vmatmul.mubr.f32.gmra.mrb[0].mxu0 %v977
      %v1877 = vpop.f32.mrb[0].mxu0
      %v1878 = vadd.f32 0.0, %v1877
      %v1879 = vpop.f32.mrb[0].mxu0
      %v1880 = vadd.f32 0.0, %v1879
      %1881 = vmatprep.mubr.f32.mxu0 0.0
      %1882 = vmatmul.mubr.f32.gmra.mrb[0].mxu0 %v980
      %v1883 = vpop.f32.mrb[0].mxu0
      %v1884 = vadd.f32 0.0, %v1883
      %v1885 = vpop.f32.mrb[0].mxu0
      %v1886 = vadd.f32 0.0, %v1885
      %1887 = vmatprep.mubr.f32.mxu0 0.0
      %1888 = vmatmul.mubr.f32.gmra.mrb[0].mxu0 %v983
      %v1889 = vpop.f32.mrb[0].mxu0
      %v1890 = vadd.f32 0.0, %v1889
      %v1891 = vpop.f32.mrb[0].mxu0
      %v1892 = vadd.f32 0.0, %v1891
      %1893 = vdwg.mxu0
      %v1894 = vmul.f32 %v1052, %v572
      %v1895 = vmul.f32 %v1054, %v573
      %v1896 = vmul.f32 %v1058, %v574
      %v1897 = vmul.f32 %v1060, %v575
      %v1898 = vmul.f32 %v1064, %v572
      %v1899 = vmul.f32 %v1066, %v573
      %v1900 = vmul.f32 %v1070, %v574
      %v1901 = vmul.f32 %v1072, %v575
      %v1902 = vmul.f32 %v1076, %v572
      %v1903 = vmul.f32 %v1078, %v573
      %v1904 = vmul.f32 %v1082, %v574
      %v1905 = vmul.f32 %v1084, %v575
      %v1906 = vadd.f32 %v1894, %v1896
      %v1907 = vrot.slane %v1906, 4
      %v1908 = vadd.f32 %v1906, %v1907
      %v1909 = vrot.slane %v1908, 2
      %v1910 = vadd.f32 %v1908, %v1909
      %v1911 = vrot.slane %v1910, 1
      %v1912 = vadd.f32 %v1910, %v1911
      %v1913 = vadd.f32 %v1895, %v1897
      %v1914 = vrot.slane %v1913, 4
      %v1915 = vadd.f32 %v1913, %v1914
      %v1916 = vrot.slane %v1915, 2
      %v1917 = vadd.f32 %v1915, %v1916
      %v1918 = vrot.slane %v1917, 1
      %v1919 = vadd.f32 %v1917, %v1918
      %v1920 = vadd.f32 %v1898, %v1900
      %v1921 = vrot.slane %v1920, 4
      %v1922 = vadd.f32 %v1920, %v1921
      %v1923 = vrot.slane %v1922, 2
      %v1924 = vadd.f32 %v1922, %v1923
      %v1925 = vrot.slane %v1924, 1
      %v1926 = vadd.f32 %v1924, %v1925
      %v1927 = vadd.f32 %v1899, %v1901
      %v1928 = vrot.slane %v1927, 4
      %v1929 = vadd.f32 %v1927, %v1928
      %v1930 = vrot.slane %v1929, 2
      %v1931 = vadd.f32 %v1929, %v1930
      %v1932 = vrot.slane %v1931, 1
      %v1933 = vadd.f32 %v1931, %v1932
      %v1934 = vadd.f32 %v1902, %v1904
      %v1935 = vrot.slane %v1934, 4
      %v1936 = vadd.f32 %v1934, %v1935
      %v1937 = vrot.slane %v1936, 2
      %v1938 = vadd.f32 %v1936, %v1937
      %v1939 = vrot.slane %v1938, 1
      %v1940 = vadd.f32 %v1938, %v1939
      %v1941 = vadd.f32 %v1903, %v1905
      %v1942 = vrot.slane %v1941, 4
      %v1943 = vadd.f32 %v1941, %v1942
      %v1944 = vrot.slane %v1943, 2
      %v1945 = vadd.f32 %v1943, %v1944
      %v1946 = vrot.slane %v1945, 1
      %v1947 = vadd.f32 %v1945, %v1946
      %v1948 = vmul.f32 %v1153, %v620
      %v1949 = vmul.f32 %v1155, %v621
      %v1950 = vmul.f32 %v1159, %v622
      %v1951 = vmul.f32 %v1161, %v623
      %v1952 = vmul.f32 %v1165, %v620
      %v1953 = vmul.f32 %v1167, %v621
      %v1954 = vmul.f32 %v1171, %v622
      %v1955 = vmul.f32 %v1173, %v623
      %v1956 = vmul.f32 %v1177, %v620
      %v1957 = vmul.f32 %v1179, %v621
      %v1958 = vmul.f32 %v1183, %v622
      %v1959 = vmul.f32 %v1185, %v623
      %v1960 = vadd.f32 %v1948, %v1950
      %v1961 = vrot.slane %v1960, 4
      %v1962 = vadd.f32 %v1960, %v1961
      %v1963 = vrot.slane %v1962, 2
      %v1964 = vadd.f32 %v1962, %v1963
      %v1965 = vrot.slane %v1964, 1
      %v1966 = vadd.f32 %v1964, %v1965
      %v1967 = vadd.f32 %v1949, %v1951
      %v1968 = vrot.slane %v1967, 4
      %v1969 = vadd.f32 %v1967, %v1968
      %v1970 = vrot.slane %v1969, 2
      %v1971 = vadd.f32 %v1969, %v1970
      %v1972 = vrot.slane %v1971, 1
      %v1973 = vadd.f32 %v1971, %v1972
      %v1974 = vadd.f32 %v1952, %v1954
      %v1975 = vrot.slane %v1974, 4
      %v1976 = vadd.f32 %v1974, %v1975
      %v1977 = vrot.slane %v1976, 2
      %v1978 = vadd.f32 %v1976, %v1977
      %v1979 = vrot.slane %v1978, 1
      %v1980 = vadd.f32 %v1978, %v1979
      %v1981 = vadd.f32 %v1953, %v1955
      %v1982 = vrot.slane %v1981, 4
      %v1983 = vadd.f32 %v1981, %v1982
      %v1984 = vrot.slane %v1983, 2
      %v1985 = vadd.f32 %v1983, %v1984
      %v1986 = vrot.slane %v1985, 1
      %v1987 = vadd.f32 %v1985, %v1986
      %v1988 = vadd.f32 %v1956, %v1958
      %v1989 = vrot.slane %v1988, 4
      %v1990 = vadd.f32 %v1988, %v1989
      %v1991 = vrot.slane %v1990, 2
      %v1992 = vadd.f32 %v1990, %v1991
      %v1993 = vrot.slane %v1992, 1
      %v1994 = vadd.f32 %v1992, %v1993
      %v1995 = vadd.f32 %v1957, %v1959
      %v1996 = vrot.slane %v1995, 4
      %v1997 = vadd.f32 %v1995, %v1996
      %v1998 = vrot.slane %v1997, 2
      %v1999 = vadd.f32 %v1997, %v1998
      %v2000 = vrot.slane %v1999, 1
      %v2001 = vadd.f32 %v1999, %v2000
      %v2002 = vmul.f32 %v1254, %v668
      %v2003 = vmul.f32 %v1256, %v669
      %v2004 = vmul.f32 %v1260, %v670
      %v2005 = vmul.f32 %v1262, %v671
      %v2006 = vmul.f32 %v1266, %v668
      %v2007 = vmul.f32 %v1268, %v669
      %v2008 = vmul.f32 %v1272, %v670
      %v2009 = vmul.f32 %v1274, %v671
      %v2010 = vmul.f32 %v1278, %v668
      %v2011 = vmul.f32 %v1280, %v669
      %v2012 = vmul.f32 %v1284, %v670
      %v2013 = vmul.f32 %v1286, %v671
      %v2014 = vadd.f32 %v2002, %v2004
      %v2015 = vrot.slane %v2014, 4
      %v2016 = vadd.f32 %v2014, %v2015
      %v2017 = vrot.slane %v2016, 2
      %v2018 = vadd.f32 %v2016, %v2017
      %v2019 = vrot.slane %v2018, 1
      %v2020 = vadd.f32 %v2018, %v2019
      %v2021 = vadd.f32 %v2003, %v2005
      %v2022 = vrot.slane %v2021, 4
      %v2023 = vadd.f32 %v2021, %v2022
      %v2024 = vrot.slane %v2023, 2
      %v2025 = vadd.f32 %v2023, %v2024
      %v2026 = vrot.slane %v2025, 1
      %v2027 = vadd.f32 %v2025, %v2026
      %v2028 = vadd.f32 %v2006, %v2008
      %v2029 = vrot.slane %v2028, 4
      %v2030 = vadd.f32 %v2028, %v2029
      %v2031 = vrot.slane %v2030, 2
      %v2032 = vadd.f32 %v2030, %v2031
      %v2033 = vrot.slane %v2032, 1
      %v2034 = vadd.f32 %v2032, %v2033
      %v2035 = vadd.f32 %v2007, %v2009
      %v2036 = vrot.slane %v2035, 4
      %v2037 = vadd.f32 %v2035, %v2036
      %v2038 = vrot.slane %v2037, 2
      %v2039 = vadd.f32 %v2037, %v2038
      %v2040 = vrot.slane %v2039, 1
      %v2041 = vadd.f32 %v2039, %v2040
      %v2042 = vadd.f32 %v2010, %v2012
      %v2043 = vrot.slane %v2042, 4
      %v2044 = vadd.f32 %v2042, %v2043
      %v2045 = vrot.slane %v2044, 2
      %v2046 = vadd.f32 %v2044, %v2045
      %v2047 = vrot.slane %v2046, 1
      %v2048 = vadd.f32 %v2046, %v2047
      %v2049 = vadd.f32 %v2011, %v2013
      %v2050 = vrot.slane %v2049, 4
      %v2051 = vadd.f32 %v2049, %v2050
      %v2052 = vrot.slane %v2051, 2
      %v2053 = vadd.f32 %v2051, %v2052
      %v2054 = vrot.slane %v2053, 1
      %v2055 = vadd.f32 %v2053, %v2054
      %v2056 = vmul.f32 %v1355, %v716
      %v2057 = vmul.f32 %v1357, %v717
      %v2058 = vmul.f32 %v1361, %v718
      %v2059 = vmul.f32 %v1363, %v719
      %v2060 = vmul.f32 %v1367, %v716
      %v2061 = vmul.f32 %v1369, %v717
      %v2062 = vmul.f32 %v1373, %v718
      %v2063 = vmul.f32 %v1375, %v719
      %v2064 = vmul.f32 %v1379, %v716
      %v2065 = vmul.f32 %v1381, %v717
      %v2066 = vmul.f32 %v1385, %v718
      %v2067 = vmul.f32 %v1387, %v719
      %v2068 = vadd.f32 %v2056, %v2058
      %v2069 = vrot.slane %v2068, 4
      %v2070 = vadd.f32 %v2068, %v2069
      %v2071 = vrot.slane %v2070, 2
      %v2072 = vadd.f32 %v2070, %v2071
      %v2073 = vrot.slane %v2072, 1
      %v2074 = vadd.f32 %v2072, %v2073
      %v2075 = vadd.f32 %v2057, %v2059
      %v2076 = vrot.slane %v2075, 4
      %v2077 = vadd.f32 %v2075, %v2076
      %v2078 = vrot.slane %v2077, 2
      %v2079 = vadd.f32 %v2077, %v2078
      %v2080 = vrot.slane %v2079, 1
      %v2081 = vadd.f32 %v2079, %v2080
      %v2082 = vadd.f32 %v2060, %v2062
      %v2083 = vrot.slane %v2082, 4
      %v2084 = vadd.f32 %v2082, %v2083
      %v2085 = vrot.slane %v2084, 2
      %v2086 = vadd.f32 %v2084, %v2085
      %v2087 = vrot.slane %v2086, 1
      %v2088 = vadd.f32 %v2086, %v2087
      %v2089 = vadd.f32 %v2061, %v2063
      %v2090 = vrot.slane %v2089, 4
      %v2091 = vadd.f32 %v2089, %v2090
      %v2092 = vrot.slane %v2091, 2
      %v2093 = vadd.f32 %v2091, %v2092
      %v2094 = vrot.slane %v2093, 1
      %v2095 = vadd.f32 %v2093, %v2094
      %v2096 = vadd.f32 %v2064, %v2066
      %v2097 = vrot.slane %v2096, 4
      %v2098 = vadd.f32 %v2096, %v2097
      %v2099 = vrot.slane %v2098, 2
      %v2100 = vadd.f32 %v2098, %v2099
      %v2101 = vrot.slane %v2100, 1
      %v2102 = vadd.f32 %v2100, %v2101
      %v2103 = vadd.f32 %v2065, %v2067
      %v2104 = vrot.slane %v2103, 4
      %v2105 = vadd.f32 %v2103, %v2104
      %v2106 = vrot.slane %v2105, 2
      %v2107 = vadd.f32 %v2105, %v2106
      %v2108 = vrot.slane %v2107, 1
      %v2109 = vadd.f32 %v2107, %v2108
      %v2110 = vmul.f32 %v1456, %v764
      %v2111 = vmul.f32 %v1458, %v765
      %v2112 = vmul.f32 %v1462, %v766
      %v2113 = vmul.f32 %v1464, %v767
      %v2114 = vmul.f32 %v1468, %v764
      %v2115 = vmul.f32 %v1470, %v765
      %v2116 = vmul.f32 %v1474, %v766
      %v2117 = vmul.f32 %v1476, %v767
      %v2118 = vmul.f32 %v1480, %v764
      %v2119 = vmul.f32 %v1482, %v765
      %v2120 = vmul.f32 %v1486, %v766
      %v2121 = vmul.f32 %v1488, %v767
      %v2122 = vadd.f32 %v2110, %v2112
      %v2123 = vrot.slane %v2122, 4
      %v2124 = vadd.f32 %v2122, %v2123
      %v2125 = vrot.slane %v2124, 2
      %v2126 = vadd.f32 %v2124, %v2125
      %v2127 = vrot.slane %v2126, 1
      %v2128 = vadd.f32 %v2126, %v2127
      %v2129 = vadd.f32 %v2111, %v2113
      %v2130 = vrot.slane %v2129, 4
      %v2131 = vadd.f32 %v2129, %v2130
      %v2132 = vrot.slane %v2131, 2
      %v2133 = vadd.f32 %v2131, %v2132
      %v2134 = vrot.slane %v2133, 1
      %v2135 = vadd.f32 %v2133, %v2134
      %v2136 = vadd.f32 %v2114, %v2116
      %v2137 = vrot.slane %v2136, 4
      %v2138 = vadd.f32 %v2136, %v2137
      %v2139 = vrot.slane %v2138, 2
      %v2140 = vadd.f32 %v2138, %v2139
      %v2141 = vrot.slane %v2140, 1
      %v2142 = vadd.f32 %v2140, %v2141
      %v2143 = vadd.f32 %v2115, %v2117
      %v2144 = vrot.slane %v2143, 4
      %v2145 = vadd.f32 %v2143, %v2144
      %v2146 = vrot.slane %v2145, 2
      %v2147 = vadd.f32 %v2145, %v2146
      %v2148 = vrot.slane %v2147, 1
      %v2149 = vadd.f32 %v2147, %v2148
      %v2150 = vadd.f32 %v2118, %v2120
      %v2151 = vrot.slane %v2150, 4
      %v2152 = vadd.f32 %v2150, %v2151
      %v2153 = vrot.slane %v2152, 2
      %v2154 = vadd.f32 %v2152, %v2153
      %v2155 = vrot.slane %v2154, 1
      %v2156 = vadd.f32 %v2154, %v2155
      %v2157 = vadd.f32 %v2119, %v2121
      %v2158 = vrot.slane %v2157, 4
      %v2159 = vadd.f32 %v2157, %v2158
      %v2160 = vrot.slane %v2159, 2
      %v2161 = vadd.f32 %v2159, %v2160
      %v2162 = vrot.slane %v2161, 1
      %v2163 = vadd.f32 %v2161, %v2162
      %v2164 = vmul.f32 %v1557, %v812
      %v2165 = vmul.f32 %v1559, %v813
      %v2166 = vmul.f32 %v1563, %v814
      %v2167 = vmul.f32 %v1565, %v815
      %v2168 = vmul.f32 %v1569, %v812
      %v2169 = vmul.f32 %v1571, %v813
      %v2170 = vmul.f32 %v1575, %v814
      %v2171 = vmul.f32 %v1577, %v815
      %v2172 = vmul.f32 %v1581, %v812
      %v2173 = vmul.f32 %v1583, %v813
      %v2174 = vmul.f32 %v1587, %v814
      %v2175 = vmul.f32 %v1589, %v815
      %v2176 = vadd.f32 %v2164, %v2166
      %v2177 = vrot.slane %v2176, 4
      %v2178 = vadd.f32 %v2176, %v2177
      %v2179 = vrot.slane %v2178, 2
      %v2180 = vadd.f32 %v2178, %v2179
      %v2181 = vrot.slane %v2180, 1
      %v2182 = vadd.f32 %v2180, %v2181
      %v2183 = vadd.f32 %v2165, %v2167
      %v2184 = vrot.slane %v2183, 4
      %v2185 = vadd.f32 %v2183, %v2184
      %v2186 = vrot.slane %v2185, 2
      %v2187 = vadd.f32 %v2185, %v2186
      %v2188 = vrot.slane %v2187, 1
      %v2189 = vadd.f32 %v2187, %v2188
      %v2190 = vadd.f32 %v2168, %v2170
      %v2191 = vrot.slane %v2190, 4
      %v2192 = vadd.f32 %v2190, %v2191
      %v2193 = vrot.slane %v2192, 2
      %v2194 = vadd.f32 %v2192, %v2193
      %v2195 = vrot.slane %v2194, 1
      %v2196 = vadd.f32 %v2194, %v2195
      %v2197 = vadd.f32 %v2169, %v2171
      %v2198 = vrot.slane %v2197, 4
      %v2199 = vadd.f32 %v2197, %v2198
      %v2200 = vrot.slane %v2199, 2
      %v2201 = vadd.f32 %v2199, %v2200
      %v2202 = vrot.slane %v2201, 1
      %v2203 = vadd.f32 %v2201, %v2202
      %v2204 = vadd.f32 %v2172, %v2174
      %v2205 = vrot.slane %v2204, 4
      %v2206 = vadd.f32 %v2204, %v2205
      %v2207 = vrot.slane %v2206, 2
      %v2208 = vadd.f32 %v2206, %v2207
      %v2209 = vrot.slane %v2208, 1
      %v2210 = vadd.f32 %v2208, %v2209
      %v2211 = vadd.f32 %v2173, %v2175
      %v2212 = vrot.slane %v2211, 4
      %v2213 = vadd.f32 %v2211, %v2212
      %v2214 = vrot.slane %v2213, 2
      %v2215 = vadd.f32 %v2213, %v2214
      %v2216 = vrot.slane %v2215, 1
      %v2217 = vadd.f32 %v2215, %v2216
      %v2218 = vmul.f32 %v1658, %v860
      %v2219 = vmul.f32 %v1660, %v861
      %v2220 = vmul.f32 %v1664, %v862
      %v2221 = vmul.f32 %v1666, %v863
      %v2222 = vmul.f32 %v1670, %v860
      %v2223 = vmul.f32 %v1672, %v861
      %v2224 = vmul.f32 %v1676, %v862
      %v2225 = vmul.f32 %v1678, %v863
      %v2226 = vmul.f32 %v1682, %v860
      %v2227 = vmul.f32 %v1684, %v861
      %v2228 = vmul.f32 %v1688, %v862
      %v2229 = vmul.f32 %v1690, %v863
      %v2230 = vadd.f32 %v2218, %v2220
      %v2231 = vrot.slane %v2230, 4
      %v2232 = vadd.f32 %v2230, %v2231
      %v2233 = vrot.slane %v2232, 2
      %v2234 = vadd.f32 %v2232, %v2233
      %v2235 = vrot.slane %v2234, 1
      %v2236 = vadd.f32 %v2234, %v2235
      %v2237 = vadd.f32 %v2219, %v2221
      %v2238 = vrot.slane %v2237, 4
      %v2239 = vadd.f32 %v2237, %v2238
      %v2240 = vrot.slane %v2239, 2
      %v2241 = vadd.f32 %v2239, %v2240
      %v2242 = vrot.slane %v2241, 1
      %v2243 = vadd.f32 %v2241, %v2242
      %v2244 = vadd.f32 %v2222, %v2224
      %v2245 = vrot.slane %v2244, 4
      %v2246 = vadd.f32 %v2244, %v2245
      %v2247 = vrot.slane %v2246, 2
      %v2248 = vadd.f32 %v2246, %v2247
      %v2249 = vrot.slane %v2248, 1
      %v2250 = vadd.f32 %v2248, %v2249
      %v2251 = vadd.f32 %v2223, %v2225
      %v2252 = vrot.slane %v2251, 4
      %v2253 = vadd.f32 %v2251, %v2252
      %v2254 = vrot.slane %v2253, 2
      %v2255 = vadd.f32 %v2253, %v2254
      %v2256 = vrot.slane %v2255, 1
      %v2257 = vadd.f32 %v2255, %v2256
      %v2258 = vadd.f32 %v2226, %v2228
      %v2259 = vrot.slane %v2258, 4
      %v2260 = vadd.f32 %v2258, %v2259
      %v2261 = vrot.slane %v2260, 2
      %v2262 = vadd.f32 %v2260, %v2261
      %v2263 = vrot.slane %v2262, 1
      %v2264 = vadd.f32 %v2262, %v2263
      %v2265 = vadd.f32 %v2227, %v2229
      %v2266 = vrot.slane %v2265, 4
      %v2267 = vadd.f32 %v2265, %v2266
      %v2268 = vrot.slane %v2267, 2
      %v2269 = vadd.f32 %v2267, %v2268
      %v2270 = vrot.slane %v2269, 1
      %v2271 = vadd.f32 %v2269, %v2270
      %v2272 = vmul.f32 %v1759, %v908
      %v2273 = vmul.f32 %v1761, %v909
      %v2274 = vmul.f32 %v1765, %v910
      %v2275 = vmul.f32 %v1767, %v911
      %v2276 = vmul.f32 %v1771, %v908
      %v2277 = vmul.f32 %v1773, %v909
      %v2278 = vmul.f32 %v1777, %v910
      %v2279 = vmul.f32 %v1779, %v911
      %v2280 = vmul.f32 %v1783, %v908
      %v2281 = vmul.f32 %v1785, %v909
      %v2282 = vmul.f32 %v1789, %v910
      %v2283 = vmul.f32 %v1791, %v911
      %v2284 = vadd.f32 %v2272, %v2274
      %v2285 = vrot.slane %v2284, 4
      %v2286 = vadd.f32 %v2284, %v2285
      %v2287 = vrot.slane %v2286, 2
      %v2288 = vadd.f32 %v2286, %v2287
      %v2289 = vrot.slane %v2288, 1
      %v2290 = vadd.f32 %v2288, %v2289
      %v2291 = vadd.f32 %v2273, %v2275
      %v2292 = vrot.slane %v2291, 4
      %v2293 = vadd.f32 %v2291, %v2292
      %v2294 = vrot.slane %v2293, 2
      %v2295 = vadd.f32 %v2293, %v2294
      %v2296 = vrot.slane %v2295, 1
      %v2297 = vadd.f32 %v2295, %v2296
      %v2298 = vadd.f32 %v2276, %v2278
      %v2299 = vrot.slane %v2298, 4
      %v2300 = vadd.f32 %v2298, %v2299
      %v2301 = vrot.slane %v2300, 2
      %v2302 = vadd.f32 %v2300, %v2301
      %v2303 = vrot.slane %v2302, 1
      %v2304 = vadd.f32 %v2302, %v2303
      %v2305 = vadd.f32 %v2277, %v2279
      %v2306 = vrot.slane %v2305, 4
      %v2307 = vadd.f32 %v2305, %v2306
      %v2308 = vrot.slane %v2307, 2
      %v2309 = vadd.f32 %v2307, %v2308
      %v2310 = vrot.slane %v2309, 1
      %v2311 = vadd.f32 %v2309, %v2310
      %v2312 = vadd.f32 %v2280, %v2282
      %v2313 = vrot.slane %v2312, 4
      %v2314 = vadd.f32 %v2312, %v2313
      %v2315 = vrot.slane %v2314, 2
      %v2316 = vadd.f32 %v2314, %v2315
      %v2317 = vrot.slane %v2316, 1
      %v2318 = vadd.f32 %v2316, %v2317
      %v2319 = vadd.f32 %v2281, %v2283
      %v2320 = vrot.slane %v2319, 4
      %v2321 = vadd.f32 %v2319, %v2320
      %v2322 = vrot.slane %v2321, 2
      %v2323 = vadd.f32 %v2321, %v2322
      %v2324 = vrot.slane %v2323, 1
      %v2325 = vadd.f32 %v2323, %v2324
      %v2326 = vmul.f32 %v1860, %v956
      %v2327 = vmul.f32 %v1862, %v957
      %v2328 = vmul.f32 %v1866, %v958
      %v2329 = vmul.f32 %v1868, %v959
      %v2330 = vmul.f32 %v1872, %v956
      %v2331 = vmul.f32 %v1874, %v957
      %v2332 = vmul.f32 %v1878, %v958
      %v2333 = vmul.f32 %v1880, %v959
      %v2334 = vmul.f32 %v1884, %v956
      %v2335 = vmul.f32 %v1886, %v957
      %v2336 = vmul.f32 %v1890, %v958
      %v2337 = vmul.f32 %v1892, %v959
      %v2338 = vadd.f32 %v2326, %v2328
      %v2339 = vrot.slane %v2338, 4
      %v2340 = vadd.f32 %v2338, %v2339
      %v2341 = vrot.slane %v2340, 2
      %v2342 = vadd.f32 %v2340, %v2341
      %v2343 = vrot.slane %v2342, 1
      %v2344 = vadd.f32 %v2342, %v2343
      %v2345 = vadd.f32 %v2327, %v2329
      %v2346 = vrot.slane %v2345, 4
      %v2347 = vadd.f32 %v2345, %v2346
      %v2348 = vrot.slane %v2347, 2
      %v2349 = vadd.f32 %v2347, %v2348
      %v2350 = vrot.slane %v2349, 1
      %v2351 = vadd.f32 %v2349, %v2350
      %v2352 = vadd.f32 %v2330, %v2332
      %v2353 = vrot.slane %v2352, 4
      %v2354 = vadd.f32 %v2352, %v2353
      %v2355 = vrot.slane %v2354, 2
      %v2356 = vadd.f32 %v2354, %v2355
      %v2357 = vrot.slane %v2356, 1
      %v2358 = vadd.f32 %v2356, %v2357
      %v2359 = vadd.f32 %v2331, %v2333
      %v2360 = vrot.slane %v2359, 4
      %v2361 = vadd.f32 %v2359, %v2360
      %v2362 = vrot.slane %v2361, 2
      %v2363 = vadd.f32 %v2361, %v2362
      %v2364 = vrot.slane %v2363, 1
      %v2365 = vadd.f32 %v2363, %v2364
      %v2366 = vadd.f32 %v2334, %v2336
      %v2367 = vrot.slane %v2366, 4
      %v2368 = vadd.f32 %v2366, %v2367
      %v2369 = vrot.slane %v2368, 2
      %v2370 = vadd.f32 %v2368, %v2369
      %v2371 = vrot.slane %v2370, 1
      %v2372 = vadd.f32 %v2370, %v2371
      %v2373 = vadd.f32 %v2335, %v2337
      %v2374 = vrot.slane %v2373, 4
      %v2375 = vadd.f32 %v2373, %v2374
      %v2376 = vrot.slane %v2375, 2
      %v2377 = vadd.f32 %v2375, %v2376
      %v2378 = vrot.slane %v2377, 1
      %v2379 = vadd.f32 %v2377, %v2378
      %vm2386 = vcmask 1041409
      %v2387 = vsel %vm2386, %v1926, %v1912
      %vm2388 = vcmask 1042434
      %v2389 = vsel %vm2388, %v1940, %v2387
      %v2390 = vsel %vm2386, %v1933, %v1919
      %v2391 = vsel %vm2388, %v1947, %v2390
      %vm2400 = vcmask 1044484
      %v2401 = vsel %vm2400, %v1980, %v1966
      %vm2402 = vcmask 1045509
      %v2403 = vsel %vm2402, %v1994, %v2401
      %v2404 = vsel %vm2400, %v1987, %v1973
      %v2405 = vsel %vm2402, %v2001, %v2404
      %vm2414 = vcmask 1047559
      %v2415 = vsel %vm2414, %v2034, %v2020
      %v2416 = vsel %vm2414, %v2041, %v2027
      %v2427 = vsel %vm2388, %v2088, %v2074
      %vm2428 = vcmask 1043459
      %v2429 = vsel %vm2428, %v2102, %v2427
      %v2430 = vsel %vm2388, %v2095, %v2081
      %v2431 = vsel %vm2428, %v2109, %v2430
      %v2440 = vsel %vm2402, %v2142, %v2128
      %vm2441 = vcmask 1046534
      %v2442 = vsel %vm2441, %v2156, %v2440
      %v2443 = vsel %vm2402, %v2149, %v2135
      %v2444 = vsel %vm2441, %v2163, %v2443
      %v2453 = vsel %vm2386, %v2210, %v2196
      %v2454 = vsel %vm2386, %v2217, %v2203
      %v2465 = vsel %vm2428, %v2250, %v2236
      %v2466 = vsel %vm2400, %v2264, %v2465
      %v2467 = vsel %vm2428, %v2257, %v2243
      %v2468 = vsel %vm2400, %v2271, %v2467
      %v2477 = vsel %vm2441, %v2304, %v2290
      %v2478 = vsel %vm2414, %v2318, %v2477
      %v2479 = vsel %vm2441, %v2311, %v2297
      %v2480 = vsel %vm2414, %v2325, %v2479
      %v2489 = vsel %vm2386, %v2358, %v2344
      %v2490 = vsel %vm2388, %v2372, %v2489
      %v2491 = vsel %vm2386, %v2365, %v2351
      %v2492 = vsel %vm2388, %v2379, %v2491
      %v2493 = vsel %vm414, %v2389, %v2403
      %v2494 = vsel %vm414, %v2391, %v2405
      %vm2495 = vcmask 1045504
      %v2496 = vsel %vm2495, %v2493, %v2415
      %v2497 = vsel %vm2495, %v2494, %v2416
      %vm2498 = vcmask 1040384
      %v2499 = vsel %vm2498, %v2048, %v2429
      %v2500 = vsel %vm2498, %v2055, %v2431
      %vm2501 = vcmask 1043456
      %v2502 = vsel %vm2501, %v2499, %v2442
      %v2503 = vsel %vm2501, %v2500, %v2444
      %vm2504 = vcmask 1046528
      %v2505 = vsel %vm2504, %v2502, %v2182
      %v2506 = vsel %vm2504, %v2503, %v2189
      %vm2507 = vcmask 1041408
      %v2508 = vsel %vm2507, %v2453, %v2466
      %v2509 = vsel %vm2507, %v2454, %v2468
      %vm2510 = vcmask 1044480
      %v2511 = vsel %vm2510, %v2508, %v2478
      %v2512 = vsel %vm2510, %v2509, %v2480
      %v2513 = vld [vmem:[%s6] sm:$0x7]
      %v2514 = vld [vmem:[%s7] sm:$0x7]
      %2516 = vset.pattern.permute.xlu0 0
      %2517 = vperm.xlu0 %2516, %v2514
      %v2518 = vpop.permute.xlu0 %2517
      %v2521 = vsel %vm404, %v2513, 0
      %v2523 = vsel %vm414, %v2490, 0
      %v2525 = vsel %vm414, %v2492, 0
      %2527 = vmatprep.subr.mxu0 %v2497
      %2528 = vmatpush1.msra.mxu0 %v2496
      %2529 = vmatprep.subr.mxu0 %v2506
      %2530 = vmatpush1.msra.mxu0 %v2505
      %2531 = vmatprep.subr.mxu0 %v2512
      %2532 = vmatpush1.msra.mxu0 %v2511
      %2533 = vmatprep.subr.mxu0 %v2525
      %2534 = vmatpush1.msra.mxu0 %v2523
      %2535 = vmatprep.subr.mxu0 0.0
      %2536 = vmatpush1.msra.mxu0 0.0
      %2537 = vmatprep.subr.mxu0 0.0
      %2538 = vmatpush1.msra.mxu0 0.0
      %2539 = vmatprep.subr.mxu0 0.0
      %2540 = vmatpush1.msra.mxu0 0.0
      %2541 = vmatprep.subr.mxu0 0.0
      %2542 = vmatpush1.msra.mxu0 0.0
      %2543 = vmatprep.subr.mxu0 0.0
      %2544 = vmatpush1.msra.mxu0 0.0
      %2545 = vmatprep.subr.mxu0 0.0
      %2546 = vmatpush1.msra.mxu0 0.0
      %2547 = vmatprep.subr.mxu0 0.0
      %2548 = vmatpush1.msra.mxu0 0.0
      %2549 = vmatprep.subr.mxu0 0.0
      %2550 = vmatpush1.msra.mxu0 0.0
      %2551 = vmatprep.subr.mxu0 0.0
      %2552 = vmatpush1.msra.mxu0 0.0
      %2553 = vmatprep.subr.mxu0 0.0
      %2554 = vmatpush1.msra.mxu0 0.0
      %2555 = vmatprep.subr.mxu0 0.0
      %2556 = vmatpush1.msra.mxu0 0.0
      %2557 = vmatprep.subr.mxu0 0.0
      %2558 = vmatpush1.msra.mxu0 0.0
      %2559 = vmatprep.subr.mxu0 0.0
      %2560 = vmatpush1.msra.mxu0 0.0
      %2561 = vmatprep.subr.mxu0 0.0
      %2562 = vmatpush1.msra.mxu0 0.0
      %2563 = vmatprep.subr.mxu0 0.0
      %2564 = vmatpush1.msra.mxu0 0.0
      %2565 = vmatprep.subr.mxu0 0.0
      %2566 = vmatpush1.msra.mxu0 0.0
      %2567 = vmatprep.subr.mxu0 0.0
      %2568 = vmatpush1.msra.mxu0 0.0
      %2569 = vmatprep.subr.mxu0 0.0
      %2570 = vmatpush1.msra.mxu0 0.0
      %2571 = vmatprep.subr.mxu0 0.0
      %2572 = vmatpush1.msra.mxu0 0.0
      %2573 = vmatprep.subr.mxu0 0.0
      %2574 = vmatpush1.msra.mxu0 0.0
      %2575 = vmatprep.subr.mxu0 0.0
      %2576 = vmatpush1.msra.mxu0 0.0
      %2577 = vmatprep.subr.mxu0 0.0
      %2578 = vmatpush1.msra.mxu0 0.0
      %2579 = vmatprep.subr.mxu0 0.0
      %2580 = vmatpush1.msra.mxu0 0.0
      %2581 = vmatprep.subr.mxu0 0.0
      %2582 = vmatpush1.msra.mxu0 0.0
      %2583 = vmatprep.subr.mxu0 0.0
      %2584 = vmatpush1.msra.mxu0 0.0
      %2585 = vmatprep.subr.mxu0 0.0
      %2586 = vmatpush1.msra.mxu0 0.0
      %2587 = vmatprep.subr.mxu0 0.0
      %2588 = vmatpush1.msra.mxu0 0.0
      %2589 = vmatprep.subr.mxu0 0.0
      %2590 = vmatpush1.msra.mxu0 0.0
      %2591 = vmatprep.mubr.f32.mxu0 0.0
      %2592 = vmatmul.mubr.f32.gmra.mrb[0].mxu0 %v2521
      %v2593 = vpop.f32.mrb[0].mxu0
      %v2594 = vadd.f32 %v2518, %v2593
      %v2595 = vpop.f32.mrb[0].mxu0
      %v2596 = vadd.f32 %v2518, %v2595
      %2597 = vdwg.mxu0
      %v2600 = vcombine.low %v2594, %v2596
      %2602 = vst [vmem:[%s385] sm:$0x77] %v2600
      %s2603 = smul.u32 2, %s24
      %p2604 = scmp.lt.s32.totalorder %s23, 1
      %s2605 = scalar_select %p2604, %s23, 1
      %p2606 = scmp.lt.s32.totalorder %s2603, 1
      %s2607 = scalar_select %p2606, %s2603, 1
      %s2608 = smul.addr %s2605, 2
      %s2609 = sadd.s32 %s2607, %s2608
      %s2610 = smul.addr %s2609, 4
      %s2611 = scalar_lea.vmem %s8, %s2610
      // Predicated region
      $region53: #{tpu_custom_call.1} parent=51 // pred_check
        %p2612 = pneg %p236
      $region54: #{tpu_custom_call.1} parent=51 // pred_check_branch
        %2614 = sbr.rel (%p2612) target = $region56
      $region55: #{tpu_custom_call.1} parent=51 // pred_region
        %s2615 = smul.u32 2, %s24
      $region56: #{tpu_custom_call.1} parent=51 // pred_fallthru
        _
    $region52: #{tpu_custom_call.1} parent=5 // pred_fallthru
      _
    %p2616 = scmp.le.s32.totalorder 2, %s14
    // Predicated region
    $region57: #{tpu_custom_call.1} parent=5 // pred_check
      %p2617 = pneg %p2616
    $region58: #{tpu_custom_call.1} parent=5 // pred_check_branch
      %2619 = sbr.rel (%p2617) target = $region60
    $region59: #{tpu_custom_call.1} parent=5 // pred_region
      %s2620 = ssub.s32 %s14, 2
      // Predicated region
      $region61: #{tpu_custom_call.1} parent=59 // pred_check
        %p2621 = pneg %p242
      $region62: #{tpu_custom_call.1} parent=59 // pred_check_branch
        %2623 = sbr.rel (%p2621) target = $region64
      $region63: #{tpu_custom_call.1} parent=59 // pred_region
        %s2624 = smul.u32 2, %s26
        %p2625 = scmp.lt.s32.totalorder %s25, 1
        %s2626 = scalar_select %p2625, %s25, 1
        %p2627 = scmp.lt.s32.totalorder %s2624, 1
        %s2628 = scalar_select %p2627, %s2624, 1
        %s2629 = smul.addr %s2626, 2
        %s2630 = sadd.s32 %s2628, %s2629
        %s2631 = smul.addr %s2630, 4
        %s2632 = scalar_lea.vmem %s8, %s2631
      $region64: #{tpu_custom_call.1} parent=59 // pred_fallthru
        _
    $region60: #{tpu_custom_call.1} parent=5 // pred_fallthru
      _
  $region6: #{tpu_custom_call.1} parent=0 // loop_footer
    %s18 = sadd.s32 1, %s14
  $region7: #{tpu_custom_call.1} parent=0 // loop_footer_branch
    %13 = sbr.rel target = $region3
  $region8: #{tpu_custom_call.1} parent=0 // loop_exit
    _

</llo_original>
